<compile_context>
chip_gen: v6e
topology: v6e:2x2x1
jax: 0.10.0
libtpu: 0.0.40
codegen_flags: <defaults>
</compile_context>

<pallas_src>
import functools

import jax
import jax.numpy as jnp
from jax.experimental import pallas as pl
from jax.experimental.pallas import tpu as pltpu

ENC = 10          # 2 + coding * 4, coding = 2
HID = 16
OUT = 3
N_MID = 10        # number of hidden Linear(16,16) layers


def _round_up(a, b):
    return ((a + b - 1) // b) * b


def mlp_kernel(x_ref, w0_ref, b0_ref, wmid_ref, bmid_ref, wout_ref, bout_ref, o_ref):
    # Folded layout: activations are (fold*features, tile_cols).  The batch lives
    # on the 128-wide lane axis AND (via the block-diagonal weights) on the
    # contraction/sublane axis, so every MXU push is >=128 rows wide.
    x = x_ref[...]                                                  # (F*ENC, C) bf16
    h = jnp.dot(w0_ref[...], x, preferred_element_type=jnp.float32) + b0_ref[...]
    h = jnp.maximum(h, 0.0).astype(jnp.bfloat16)                    # (F*HID, C)
    for i in range(N_MID):                                          # statically unrolled
        h = (jnp.dot(wmid_ref[i], h, preferred_element_type=jnp.float32)
             + bmid_ref[i])
        h = jnp.maximum(h, 0.0).astype(jnp.bfloat16)
    o = jnp.dot(wout_ref[...], h, preferred_element_type=jnp.float32) + bout_ref[...]
    o_ref[...] = jnp.maximum(o, 0.0).astype(o_ref.dtype)            # (F*OUT, C) f32


def init_params(key):
    """Torch-convention params: W is (out_features, in_features), b is (out,)."""
    ks = jax.random.split(key, 3)

    def linear_init(k, fan_in, fan_out):
        kw, kb = jax.random.split(k)
        bound = 1.0 / jnp.sqrt(fan_in)
        w = jax.random.uniform(kw, (fan_out, fan_in), jnp.float32, -bound, bound)
        b = jax.random.uniform(kb, (fan_out,), jnp.float32, -bound, bound)
        return w, b

    w0, b0 = linear_init(ks[0], ENC, HID)
    mids = [linear_init(k, HID, HID) for k in jax.random.split(ks[1], N_MID)]
    wmid = jnp.stack([w for w, _ in mids])        # (N_MID, HID, HID)
    bmid = jnp.stack([b for _, b in mids])        # (N_MID, HID)
    wout, bout = linear_init(ks[2], HID, OUT)
    return (w0, b0, wmid, bmid, wout, bout)


def pack_params(params, fold=8):
    """One-time repack: block-diagonal bf16 weight slabs + tiled f32 biases."""
    w0, b0, wmid, bmid, wout, bout = params
    eye = jnp.eye(fold, dtype=jnp.float32)

    def bd(w):                                    # (o, i) -> (fold*o, fold*i)
        return jnp.kron(eye, w).astype(jnp.bfloat16)

    def bias(b):                                  # (o,) -> (fold*o, 1)
        return jnp.tile(b, fold).reshape(fold * b.shape[0], 1).astype(jnp.float32)

    w0_bd = bd(w0)                                        # (F*HID, F*ENC) bf16
    b0_f = bias(b0)                                       # (F*HID, 1)     f32
    wmid_bd = jnp.stack([bd(wmid[i]) for i in range(N_MID)])   # (N_MID, F*HID, F*HID)
    bmid_f = jnp.stack([bias(bmid[i]) for i in range(N_MID)])  # (N_MID, F*HID, 1)
    wout_bd = bd(wout)                                    # (F*OUT, F*HID) bf16
    bout_f = bias(bout)                                   # (F*OUT, 1)     f32
    return (w0_bd, b0_f, wmid_bd, bmid_f, wout_bd, bout_f)


@functools.partial(jax.jit, static_argnames=("batch_tile", "fold"))
def neuralistica_forward(x, packed, *, batch_tile=4096, fold=8):
    """x: (n, ENC) f32 -> (n, OUT) f32.  Arbitrary n handled via padding."""
    w0_bd, b0_f, wmid_bd, bmid_f, wout_bd, bout_f = packed
    n = x.shape[0]

    quantum = 128 * fold                           # tile_cols must be a lane multiple
    bt = max(quantum, _round_up(batch_tile, quantum))
    # Cap the tile so a large batch yields >=2 grid steps (engage both v7x TCs).
    half = _round_up((max(n, 1) + 1) // 2, quantum)
    tile = min(bt, half)
    n_pad = _round_up(max(n, 1), tile)
    num_tiles = n_pad // tile
    tile_cols = tile // fold
    n_cols = num_tiles * tile_cols

    # Fold + bf16 cast: one fused pad/reshape/transpose in the wrapper (layout
    # plumbing only; callers that keep the folded layout can skip this entirely).
    x_pad = jnp.zeros((n_pad, ENC), jnp.float32).at[:n].set(x.astype(jnp.float32))
    x_f = (x_pad.reshape(num_tiles, fold, tile_cols, ENC)
                 .transpose(1, 3, 0, 2)
                 .reshape(fold * ENC, n_cols)
                 .astype(jnp.bfloat16))

    flops = 2 * fold * (ENC * HID + N_MID * HID * HID + HID * OUT) * n_pad
    bytes_w = 2 * (w0_bd.size + wmid_bd.size + wout_bd.size) \
        + 4 * (b0_f.size + bmid_f.size + bout_f.size)
    cost = pl.CostEstimate(
        flops=flops,
        transcendentals=0,
        bytes_accessed=2 * x_f.size + 4 * fold * OUT * n_cols + bytes_w,
    )

    out_f = pl.pallas_call(
        mlp_kernel,
        out_shape=jax.ShapeDtypeStruct((fold * OUT, n_cols), jnp.float32),
        grid_spec=pltpu.PrefetchScalarGridSpec(
            num_scalar_prefetch=0,
            grid=(num_tiles,),
            in_specs=[
                pl.BlockSpec((fold * ENC, tile_cols), lambda i: (0, i)),       # x (folded)
                pl.BlockSpec((fold * HID, fold * ENC), lambda i: (0, 0)),      # w0 block-diag
                pl.BlockSpec((fold * HID, 1), lambda i: (0, 0)),               # b0
                pl.BlockSpec((N_MID, fold * HID, fold * HID),
                             lambda i: (0, 0, 0)),                             # mid W slabs
                pl.BlockSpec((N_MID, fold * HID, 1), lambda i: (0, 0, 0)),     # mid biases
                pl.BlockSpec((fold * OUT, fold * HID), lambda i: (0, 0)),      # w_out
                pl.BlockSpec((fold * OUT, 1), lambda i: (0, 0)),               # b_out
            ],
            out_specs=pl.BlockSpec((fold * OUT, tile_cols), lambda i: (0, i)),  # lane-dense
        ),
        compiler_params=pltpu.CompilerParams(
            dimension_semantics=("parallel",),
        ),
        cost_estimate=cost,
    )(x_f, w0_bd, b0_f, wmid_bd, bmid_f, wout_bd, bout_f)

    # Unfold back to (n, OUT).
    out = (out_f.reshape(fold, OUT, num_tiles, tile_cols)
                 .transpose(2, 0, 3, 1)
                 .reshape(n_pad, OUT))[:n]
    return out


def reference_forward_f32(x, params):
    """Pure-f32 JAX reference (PyTorch semantics, standard (batch, feat) layout)."""
    w0, b0, wmid, bmid, wout, bout = params
    h = jnp.maximum(x @ w0.T + b0, 0.0)
    for i in range(N_MID):
        h = jnp.maximum(h @ wmid[i].T + bmid[i], 0.0)
    return jnp.maximum(h @ wout.T + bout, 0.0)


def reference_forward_bf16(x, params):
    """Reference matching the kernel's numerics: bf16 operands, f32 accumulate."""
    w0, b0, wmid, bmid, wout, bout = params
    bf = jnp.bfloat16
    h = x.astype(bf)
    h = jnp.maximum(
        jnp.dot(h, w0.astype(bf).T, preferred_element_type=jnp.float32) + b0, 0.0)
    for i in range(N_MID):
        h = h.astype(bf)
        h = jnp.maximum(
            jnp.dot(h, wmid[i].astype(bf).T, preferred_element_type=jnp.float32)
            + bmid[i], 0.0)
    h = h.astype(bf)
    return jnp.maximum(
        jnp.dot(h, wout.astype(bf).T, preferred_element_type=jnp.float32) + bout, 0.0)


if __name__ == "__main__":
    key = jax.random.PRNGKey(0)
    k_param, k_x = jax.random.split(key)

    params = init_params(k_param)
    packed = pack_params(params, fold=8)

    batch = 16
    x = jax.random.normal(k_x, (batch, ENC), jnp.float32)

    out = neuralistica_forward(x, packed, batch_tile=4096, fold=8)
    out = jax.block_until_ready(out)

    ref = reference_forward_bf16(x, params)
    assert out.shape == (batch, OUT)
    assert jnp.allclose(out, ref, atol=1e-3, rtol=1e-3), "mismatch vs bf16 reference"

    print("KERNEL_OK")
</pallas_src>

<mosaic_0001>
module attributes {stable_mosaic.version = 11 : i64} {
  func.func @mlp_kernel(%arg0: i32, %arg1: memref<80x128xbf16, #tpu.memory_space<vmem>>, %arg2: memref<128x80xbf16, #tpu.memory_space<vmem>>, %arg3: memref<128x1xf32, #tpu.memory_space<vmem>>, %arg4: memref<10x128x128xbf16, #tpu.memory_space<vmem>>, %arg5: memref<10x128x1xf32, #tpu.memory_space<vmem>>, %arg6: memref<24x128xbf16, #tpu.memory_space<vmem>>, %arg7: memref<24x1xf32, #tpu.memory_space<vmem>>, %arg8: memref<24x128xf32, #tpu.memory_space<vmem>>) attributes {dimension_semantics = [#tpu.dimension_semantics<parallel>], iteration_bounds = array<i64: 1>, scalar_prefetch = 0 : i64, scratch_operands = 0 : i64, tpu.core_type = #tpu.core_type<tc>, window_params = [{transform_indices = @transform_0, window_bounds = array<i64: 80, 128>}, {pipeline_mode = #tpu.pipeline_mode<synchronous>, transform_indices = @transform_1, window_bounds = array<i64: 128, 80>}, {pipeline_mode = #tpu.pipeline_mode<synchronous>, transform_indices = @transform_2, window_bounds = array<i64: 128, 1>}, {pipeline_mode = #tpu.pipeline_mode<synchronous>, transform_indices = @transform_3, window_bounds = array<i64: 10, 128, 128>}, {pipeline_mode = #tpu.pipeline_mode<synchronous>, transform_indices = @transform_4, window_bounds = array<i64: 10, 128, 1>}, {pipeline_mode = #tpu.pipeline_mode<synchronous>, transform_indices = @transform_5, window_bounds = array<i64: 24, 128>}, {pipeline_mode = #tpu.pipeline_mode<synchronous>, transform_indices = @transform_6, window_bounds = array<i64: 24, 1>}, {transform_indices = @transform_7, window_bounds = array<i64: 24, 128>}]} {
    %c0 = arith.constant 0 : index
    %c0_0 = arith.constant 0 : index
    %0 = vector.load %arg1[%c0, %c0_0] : memref<80x128xbf16, #tpu.memory_space<vmem>>, vector<80x128xbf16>
    %c0_1 = arith.constant 0 : index
    %c0_2 = arith.constant 0 : index
    %1 = vector.load %arg2[%c0_1, %c0_2] : memref<128x80xbf16, #tpu.memory_space<vmem>>, vector<128x80xbf16>
    %cst = arith.constant dense<0.000000e+00> : vector<128x128xf32>
    %2 = tpu.matmul %1, %0, %cst {dimension_numbers = #tpu.dot_dimension_numbers<[1], [0], [0], [1], [0, 0, 1, 1], [], []>} : vector<128x80xbf16>, vector<80x128xbf16>, vector<128x128xf32> -> vector<128x128xf32>
    %c0_3 = arith.constant 0 : index
    %c0_4 = arith.constant 0 : index
    %3 = vector.load %arg3[%c0_3, %c0_4] : memref<128x1xf32, #tpu.memory_space<vmem>>, vector<128x1xf32>
    %4 = vector.broadcast %3 : vector<128x1xf32> to vector<128x128xf32>
    %5 = arith.addf %2, %4 : vector<128x128xf32>
    %cst_5 = arith.constant 0.000000e+00 : f32
    %6 = vector.broadcast %cst_5 : f32 to vector<128x128xf32>
    %7 = arith.maximumf %5, %6 : vector<128x128xf32>
    %8 = arith.truncf %7 : vector<128x128xf32> to vector<128x128xbf16>
    %c0_6 = arith.constant 0 : index
    %c0_7 = arith.constant 0 : index
    %c0_8 = arith.constant 0 : index
    %9 = vector.load %arg4[%c0_6, %c0_7, %c0_8] : memref<10x128x128xbf16, #tpu.memory_space<vmem>>, vector<1x128x128xbf16>
    %10 = vector.shape_cast %9 : vector<1x128x128xbf16> to vector<128x128xbf16>
    %cst_9 = arith.constant dense<0.000000e+00> : vector<128x128xf32>
    %11 = tpu.matmul %10, %8, %cst_9 {dimension_numbers = #tpu.dot_dimension_numbers<[1], [0], [0], [1], [0, 0, 1, 1], [], []>} : vector<128x128xbf16>, vector<128x128xbf16>, vector<128x128xf32> -> vector<128x128xf32>
    %c0_10 = arith.constant 0 : index
    %c0_11 = arith.constant 0 : index
    %c0_12 = arith.constant 0 : index
    %12 = vector.load %arg5[%c0_10, %c0_11, %c0_12] : memref<10x128x1xf32, #tpu.memory_space<vmem>>, vector<1x128x1xf32>
    %13 = vector.shape_cast %12 : vector<1x128x1xf32> to vector<128x1xf32>
    %14 = vector.broadcast %13 : vector<128x1xf32> to vector<128x128xf32>
    %15 = arith.addf %11, %14 : vector<128x128xf32>
    %cst_13 = arith.constant 0.000000e+00 : f32
    %16 = vector.broadcast %cst_13 : f32 to vector<128x128xf32>
    %17 = arith.maximumf %15, %16 : vector<128x128xf32>
    %18 = arith.truncf %17 : vector<128x128xf32> to vector<128x128xbf16>
    %c1 = arith.constant 1 : index
    %c0_14 = arith.constant 0 : index
    %c0_15 = arith.constant 0 : index
    %19 = vector.load %arg4[%c1, %c0_14, %c0_15] : memref<10x128x128xbf16, #tpu.memory_space<vmem>>, vector<1x128x128xbf16>
    %20 = vector.shape_cast %19 : vector<1x128x128xbf16> to vector<128x128xbf16>
    %cst_16 = arith.constant dense<0.000000e+00> : vector<128x128xf32>
    %21 = tpu.matmul %20, %18, %cst_16 {dimension_numbers = #tpu.dot_dimension_numbers<[1], [0], [0], [1], [0, 0, 1, 1], [], []>} : vector<128x128xbf16>, vector<128x128xbf16>, vector<128x128xf32> -> vector<128x128xf32>
    %c1_17 = arith.constant 1 : index
    %c0_18 = arith.constant 0 : index
    %c0_19 = arith.constant 0 : index
    %22 = vector.load %arg5[%c1_17, %c0_18, %c0_19] : memref<10x128x1xf32, #tpu.memory_space<vmem>>, vector<1x128x1xf32>
    %23 = vector.shape_cast %22 : vector<1x128x1xf32> to vector<128x1xf32>
    %24 = vector.broadcast %23 : vector<128x1xf32> to vector<128x128xf32>
    %25 = arith.addf %21, %24 : vector<128x128xf32>
    %cst_20 = arith.constant 0.000000e+00 : f32
    %26 = vector.broadcast %cst_20 : f32 to vector<128x128xf32>
    %27 = arith.maximumf %25, %26 : vector<128x128xf32>
    %28 = arith.truncf %27 : vector<128x128xf32> to vector<128x128xbf16>
    %c2 = arith.constant 2 : index
    %c0_21 = arith.constant 0 : index
    %c0_22 = arith.constant 0 : index
    %29 = vector.load %arg4[%c2, %c0_21, %c0_22] : memref<10x128x128xbf16, #tpu.memory_space<vmem>>, vector<1x128x128xbf16>
    %30 = vector.shape_cast %29 : vector<1x128x128xbf16> to vector<128x128xbf16>
    %cst_23 = arith.constant dense<0.000000e+00> : vector<128x128xf32>
    %31 = tpu.matmul %30, %28, %cst_23 {dimension_numbers = #tpu.dot_dimension_numbers<[1], [0], [0], [1], [0, 0, 1, 1], [], []>} : vector<128x128xbf16>, vector<128x128xbf16>, vector<128x128xf32> -> vector<128x128xf32>
    %c2_24 = arith.constant 2 : index
    %c0_25 = arith.constant 0 : index
    %c0_26 = arith.constant 0 : index
    %32 = vector.load %arg5[%c2_24, %c0_25, %c0_26] : memref<10x128x1xf32, #tpu.memory_space<vmem>>, vector<1x128x1xf32>
    %33 = vector.shape_cast %32 : vector<1x128x1xf32> to vector<128x1xf32>
    %34 = vector.broadcast %33 : vector<128x1xf32> to vector<128x128xf32>
    %35 = arith.addf %31, %34 : vector<128x128xf32>
    %cst_27 = arith.constant 0.000000e+00 : f32
    %36 = vector.broadcast %cst_27 : f32 to vector<128x128xf32>
    %37 = arith.maximumf %35, %36 : vector<128x128xf32>
    %38 = arith.truncf %37 : vector<128x128xf32> to vector<128x128xbf16>
    %c3 = arith.constant 3 : index
    %c0_28 = arith.constant 0 : index
    %c0_29 = arith.constant 0 : index
    %39 = vector.load %arg4[%c3, %c0_28, %c0_29] : memref<10x128x128xbf16, #tpu.memory_space<vmem>>, vector<1x128x128xbf16>
    %40 = vector.shape_cast %39 : vector<1x128x128xbf16> to vector<128x128xbf16>
    %cst_30 = arith.constant dense<0.000000e+00> : vector<128x128xf32>
    %41 = tpu.matmul %40, %38, %cst_30 {dimension_numbers = #tpu.dot_dimension_numbers<[1], [0], [0], [1], [0, 0, 1, 1], [], []>} : vector<128x128xbf16>, vector<128x128xbf16>, vector<128x128xf32> -> vector<128x128xf32>
    %c3_31 = arith.constant 3 : index
    %c0_32 = arith.constant 0 : index
    %c0_33 = arith.constant 0 : index
    %42 = vector.load %arg5[%c3_31, %c0_32, %c0_33] : memref<10x128x1xf32, #tpu.memory_space<vmem>>, vector<1x128x1xf32>
    %43 = vector.shape_cast %42 : vector<1x128x1xf32> to vector<128x1xf32>
    %44 = vector.broadcast %43 : vector<128x1xf32> to vector<128x128xf32>
    %45 = arith.addf %41, %44 : vector<128x128xf32>
    %cst_34 = arith.constant 0.000000e+00 : f32
    %46 = vector.broadcast %cst_34 : f32 to vector<128x128xf32>
    %47 = arith.maximumf %45, %46 : vector<128x128xf32>
    %48 = arith.truncf %47 : vector<128x128xf32> to vector<128x128xbf16>
    %c4 = arith.constant 4 : index
    %c0_35 = arith.constant 0 : index
    %c0_36 = arith.constant 0 : index
    %49 = vector.load %arg4[%c4, %c0_35, %c0_36] : memref<10x128x128xbf16, #tpu.memory_space<vmem>>, vector<1x128x128xbf16>
    %50 = vector.shape_cast %49 : vector<1x128x128xbf16> to vector<128x128xbf16>
    %cst_37 = arith.constant dense<0.000000e+00> : vector<128x128xf32>
    %51 = tpu.matmul %50, %48, %cst_37 {dimension_numbers = #tpu.dot_dimension_numbers<[1], [0], [0], [1], [0, 0, 1, 1], [], []>} : vector<128x128xbf16>, vector<128x128xbf16>, vector<128x128xf32> -> vector<128x128xf32>
    %c4_38 = arith.constant 4 : index
    %c0_39 = arith.constant 0 : index
    %c0_40 = arith.constant 0 : index
    %52 = vector.load %arg5[%c4_38, %c0_39, %c0_40] : memref<10x128x1xf32, #tpu.memory_space<vmem>>, vector<1x128x1xf32>
    %53 = vector.shape_cast %52 : vector<1x128x1xf32> to vector<128x1xf32>
    %54 = vector.broadcast %53 : vector<128x1xf32> to vector<128x128xf32>
    %55 = arith.addf %51, %54 : vector<128x128xf32>
    %cst_41 = arith.constant 0.000000e+00 : f32
    %56 = vector.broadcast %cst_41 : f32 to vector<128x128xf32>
    %57 = arith.maximumf %55, %56 : vector<128x128xf32>
    %58 = arith.truncf %57 : vector<128x128xf32> to vector<128x128xbf16>
    %c5 = arith.constant 5 : index
    %c0_42 = arith.constant 0 : index
    %c0_43 = arith.constant 0 : index
    %59 = vector.load %arg4[%c5, %c0_42, %c0_43] : memref<10x128x128xbf16, #tpu.memory_space<vmem>>, vector<1x128x128xbf16>
    %60 = vector.shape_cast %59 : vector<1x128x128xbf16> to vector<128x128xbf16>
    %cst_44 = arith.constant dense<0.000000e+00> : vector<128x128xf32>
    %61 = tpu.matmul %60, %58, %cst_44 {dimension_numbers = #tpu.dot_dimension_numbers<[1], [0], [0], [1], [0, 0, 1, 1], [], []>} : vector<128x128xbf16>, vector<128x128xbf16>, vector<128x128xf32> -> vector<128x128xf32>
    %c5_45 = arith.constant 5 : index
    %c0_46 = arith.constant 0 : index
    %c0_47 = arith.constant 0 : index
    %62 = vector.load %arg5[%c5_45, %c0_46, %c0_47] : memref<10x128x1xf32, #tpu.memory_space<vmem>>, vector<1x128x1xf32>
    %63 = vector.shape_cast %62 : vector<1x128x1xf32> to vector<128x1xf32>
    %64 = vector.broadcast %63 : vector<128x1xf32> to vector<128x128xf32>
    %65 = arith.addf %61, %64 : vector<128x128xf32>
    %cst_48 = arith.constant 0.000000e+00 : f32
    %66 = vector.broadcast %cst_48 : f32 to vector<128x128xf32>
    %67 = arith.maximumf %65, %66 : vector<128x128xf32>
    %68 = arith.truncf %67 : vector<128x128xf32> to vector<128x128xbf16>
    %c6 = arith.constant 6 : index
    %c0_49 = arith.constant 0 : index
    %c0_50 = arith.constant 0 : index
    %69 = vector.load %arg4[%c6, %c0_49, %c0_50] : memref<10x128x128xbf16, #tpu.memory_space<vmem>>, vector<1x128x128xbf16>
    %70 = vector.shape_cast %69 : vector<1x128x128xbf16> to vector<128x128xbf16>
    %cst_51 = arith.constant dense<0.000000e+00> : vector<128x128xf32>
    %71 = tpu.matmul %70, %68, %cst_51 {dimension_numbers = #tpu.dot_dimension_numbers<[1], [0], [0], [1], [0, 0, 1, 1], [], []>} : vector<128x128xbf16>, vector<128x128xbf16>, vector<128x128xf32> -> vector<128x128xf32>
    %c6_52 = arith.constant 6 : index
    %c0_53 = arith.constant 0 : index
    %c0_54 = arith.constant 0 : index
    %72 = vector.load %arg5[%c6_52, %c0_53, %c0_54] : memref<10x128x1xf32, #tpu.memory_space<vmem>>, vector<1x128x1xf32>
    %73 = vector.shape_cast %72 : vector<1x128x1xf32> to vector<128x1xf32>
    %74 = vector.broadcast %73 : vector<128x1xf32> to vector<128x128xf32>
    %75 = arith.addf %71, %74 : vector<128x128xf32>
    %cst_55 = arith.constant 0.000000e+00 : f32
    %76 = vector.broadcast %cst_55 : f32 to vector<128x128xf32>
    %77 = arith.maximumf %75, %76 : vector<128x128xf32>
    %78 = arith.truncf %77 : vector<128x128xf32> to vector<128x128xbf16>
    %c7 = arith.constant 7 : index
    %c0_56 = arith.constant 0 : index
    %c0_57 = arith.constant 0 : index
    %79 = vector.load %arg4[%c7, %c0_56, %c0_57] : memref<10x128x128xbf16, #tpu.memory_space<vmem>>, vector<1x128x128xbf16>
    %80 = vector.shape_cast %79 : vector<1x128x128xbf16> to vector<128x128xbf16>
    %cst_58 = arith.constant dense<0.000000e+00> : vector<128x128xf32>
    %81 = tpu.matmul %80, %78, %cst_58 {dimension_numbers = #tpu.dot_dimension_numbers<[1], [0], [0], [1], [0, 0, 1, 1], [], []>} : vector<128x128xbf16>, vector<128x128xbf16>, vector<128x128xf32> -> vector<128x128xf32>
    %c7_59 = arith.constant 7 : index
    %c0_60 = arith.constant 0 : index
    %c0_61 = arith.constant 0 : index
    %82 = vector.load %arg5[%c7_59, %c0_60, %c0_61] : memref<10x128x1xf32, #tpu.memory_space<vmem>>, vector<1x128x1xf32>
    %83 = vector.shape_cast %82 : vector<1x128x1xf32> to vector<128x1xf32>
    %84 = vector.broadcast %83 : vector<128x1xf32> to vector<128x128xf32>
    %85 = arith.addf %81, %84 : vector<128x128xf32>
    %cst_62 = arith.constant 0.000000e+00 : f32
    %86 = vector.broadcast %cst_62 : f32 to vector<128x128xf32>
    %87 = arith.maximumf %85, %86 : vector<128x128xf32>
    %88 = arith.truncf %87 : vector<128x128xf32> to vector<128x128xbf16>
    %c8 = arith.constant 8 : index
    %c0_63 = arith.constant 0 : index
    %c0_64 = arith.constant 0 : index
    %89 = vector.load %arg4[%c8, %c0_63, %c0_64] : memref<10x128x128xbf16, #tpu.memory_space<vmem>>, vector<1x128x128xbf16>
    %90 = vector.shape_cast %89 : vector<1x128x128xbf16> to vector<128x128xbf16>
    %cst_65 = arith.constant dense<0.000000e+00> : vector<128x128xf32>
    %91 = tpu.matmul %90, %88, %cst_65 {dimension_numbers = #tpu.dot_dimension_numbers<[1], [0], [0], [1], [0, 0, 1, 1], [], []>} : vector<128x128xbf16>, vector<128x128xbf16>, vector<128x128xf32> -> vector<128x128xf32>
    %c8_66 = arith.constant 8 : index
    %c0_67 = arith.constant 0 : index
    %c0_68 = arith.constant 0 : index
    %92 = vector.load %arg5[%c8_66, %c0_67, %c0_68] : memref<10x128x1xf32, #tpu.memory_space<vmem>>, vector<1x128x1xf32>
    %93 = vector.shape_cast %92 : vector<1x128x1xf32> to vector<128x1xf32>
    %94 = vector.broadcast %93 : vector<128x1xf32> to vector<128x128xf32>
    %95 = arith.addf %91, %94 : vector<128x128xf32>
    %cst_69 = arith.constant 0.000000e+00 : f32
    %96 = vector.broadcast %cst_69 : f32 to vector<128x128xf32>
    %97 = arith.maximumf %95, %96 : vector<128x128xf32>
    %98 = arith.truncf %97 : vector<128x128xf32> to vector<128x128xbf16>
    %c9 = arith.constant 9 : index
    %c0_70 = arith.constant 0 : index
    %c0_71 = arith.constant 0 : index
    %99 = vector.load %arg4[%c9, %c0_70, %c0_71] : memref<10x128x128xbf16, #tpu.memory_space<vmem>>, vector<1x128x128xbf16>
    %100 = vector.shape_cast %99 : vector<1x128x128xbf16> to vector<128x128xbf16>
    %cst_72 = arith.constant dense<0.000000e+00> : vector<128x128xf32>
    %101 = tpu.matmul %100, %98, %cst_72 {dimension_numbers = #tpu.dot_dimension_numbers<[1], [0], [0], [1], [0, 0, 1, 1], [], []>} : vector<128x128xbf16>, vector<128x128xbf16>, vector<128x128xf32> -> vector<128x128xf32>
    %c9_73 = arith.constant 9 : index
    %c0_74 = arith.constant 0 : index
    %c0_75 = arith.constant 0 : index
    %102 = vector.load %arg5[%c9_73, %c0_74, %c0_75] : memref<10x128x1xf32, #tpu.memory_space<vmem>>, vector<1x128x1xf32>
    %103 = vector.shape_cast %102 : vector<1x128x1xf32> to vector<128x1xf32>
    %104 = vector.broadcast %103 : vector<128x1xf32> to vector<128x128xf32>
    %105 = arith.addf %101, %104 : vector<128x128xf32>
    %cst_76 = arith.constant 0.000000e+00 : f32
    %106 = vector.broadcast %cst_76 : f32 to vector<128x128xf32>
    %107 = arith.maximumf %105, %106 : vector<128x128xf32>
    %108 = arith.truncf %107 : vector<128x128xf32> to vector<128x128xbf16>
    %c0_77 = arith.constant 0 : index
    %c0_78 = arith.constant 0 : index
    %109 = vector.load %arg6[%c0_77, %c0_78] : memref<24x128xbf16, #tpu.memory_space<vmem>>, vector<24x128xbf16>
    %cst_79 = arith.constant dense<0.000000e+00> : vector<24x128xf32>
    %110 = tpu.matmul %109, %108, %cst_79 {dimension_numbers = #tpu.dot_dimension_numbers<[1], [0], [0], [1], [0, 0, 1, 1], [], []>} : vector<24x128xbf16>, vector<128x128xbf16>, vector<24x128xf32> -> vector<24x128xf32>
    %c0_80 = arith.constant 0 : index
    %c0_81 = arith.constant 0 : index
    %111 = vector.load %arg7[%c0_80, %c0_81] : memref<24x1xf32, #tpu.memory_space<vmem>>, vector<24x1xf32>
    %112 = vector.broadcast %111 : vector<24x1xf32> to vector<24x128xf32>
    %113 = arith.addf %110, %112 : vector<24x128xf32>
    %cst_82 = arith.constant 0.000000e+00 : f32
    %114 = vector.broadcast %cst_82 : f32 to vector<24x128xf32>
    %115 = arith.maximumf %113, %114 : vector<24x128xf32>
    %c0_83 = arith.constant 0 : index
    %c0_84 = arith.constant 0 : index
    %116 = vector.load %arg8[%c0_83, %c0_84] : memref<24x128xf32, #tpu.memory_space<vmem>>, vector<24x128xf32>
    tpu.vector_store %arg8[%c0_83, %c0_84], %115 {strides = array<i32>} : memref<24x128xf32, #tpu.memory_space<vmem>>, vector<24x128xf32>,
    return
  }
  func.func @transform_0(%arg0: i32) -> (i32, i32) {
    %c0_i32 = arith.constant 0 : i32
    %c0_i32_0 = arith.constant 0 : i32
    return %c0_i32, %arg0 : i32, i32
  }
  func.func @transform_1(%arg0: i32) -> (i32, i32) {
    %c0_i32 = arith.constant 0 : i32
    %c0_i32_0 = arith.constant 0 : i32
    %c0_i32_1 = arith.constant 0 : i32
    return %c0_i32, %c0_i32_0 : i32, i32
  }
  func.func @transform_2(%arg0: i32) -> (i32, i32) {
    %c0_i32 = arith.constant 0 : i32
    %c0_i32_0 = arith.constant 0 : i32
    %c0_i32_1 = arith.constant 0 : i32
    return %c0_i32, %c0_i32_0 : i32, i32
  }
  func.func @transform_3(%arg0: i32) -> (i32, i32, i32) {
    %c0_i32 = arith.constant 0 : i32
    %c0_i32_0 = arith.constant 0 : i32
    %c0_i32_1 = arith.constant 0 : i32
    %c0_i32_2 = arith.constant 0 : i32
    return %c0_i32, %c0_i32_0, %c0_i32_1 : i32, i32, i32
  }
  func.func @transform_4(%arg0: i32) -> (i32, i32, i32) {
    %c0_i32 = arith.constant 0 : i32
    %c0_i32_0 = arith.constant 0 : i32
    %c0_i32_1 = arith.constant 0 : i32
    %c0_i32_2 = arith.constant 0 : i32
    return %c0_i32, %c0_i32_0, %c0_i32_1 : i32, i32, i32
  }
  func.func @transform_5(%arg0: i32) -> (i32, i32) {
    %c0_i32 = arith.constant 0 : i32
    %c0_i32_0 = arith.constant 0 : i32
    %c0_i32_1 = arith.constant 0 : i32
    return %c0_i32, %c0_i32_0 : i32, i32
  }
  func.func @transform_6(%arg0: i32) -> (i32, i32) {
    %c0_i32 = arith.constant 0 : i32
    %c0_i32_0 = arith.constant 0 : i32
    %c0_i32_1 = arith.constant 0 : i32
    return %c0_i32, %c0_i32_0 : i32, i32
  }
  func.func @transform_7(%arg0: i32) -> (i32, i32) {
    %c0_i32 = arith.constant 0 : i32
    %c0_i32_0 = arith.constant 0 : i32
    return %c0_i32, %arg0 : i32, i32
  }
}

</mosaic_0001>

<llo_original>
// kernel: neuralistica_forward.1
$region0: #{neuralistica_forward.1}
  #allocation0 [shape = 'u32[]', space=smem, size = 0x4, offset = 0x4, fixed_abs, tag = 'smem constant byte address 0x4 - core index']
  #allocation1 [shape = 'u32[144,128]{1,0:T(1,128)}', space=vmem, size = 0x12000, scoped, tag = 'internal scratch']
  %s0 = inlined_call_operand.vmem [shape: bf16[80,128], index: 0, kind: input, shape index: {}]
  %s1 = inlined_call_operand.vmem [shape: bf16[128,80], index: 1, kind: input, shape index: {}]
  %s2 = inlined_call_operand.vmem [shape: f32[128,1], index: 2, kind: input, shape index: {}]
  %s3 = inlined_call_operand.vmem [shape: bf16[10,128,128], index: 3, kind: input, shape index: {}]
  %s4 = inlined_call_operand.vmem [shape: f32[10,128,1], index: 4, kind: input, shape index: {}]
  %s5 = inlined_call_operand.vmem [shape: bf16[24,128], index: 5, kind: input, shape index: {}]
  %s6 = inlined_call_operand.vmem [shape: f32[24,1], index: 6, kind: input, shape index: {}]
  %s7 = inlined_call_operand.vmem [shape: f32[24,128], index: 7, kind: output, shape index: {}]
  %s8 = sld [smem:[#allocation0]]
  $region38: #{neuralistica_forward.1} parent=0
    _
  %s10 = ssub.s32 1, %s8
  %s11 = scalar_select 0, %s10, %s8
  // Predicated region
  $region2: #{neuralistica_forward.1} parent=0 // pred_check
    _
  $region3: #{neuralistica_forward.1} parent=0 // pred_check_branch
    %13 = sbr.rel (0) target = $region5
  $region4: #{neuralistica_forward.1} parent=0 // pred_region
    _
  $region5: #{neuralistica_forward.1} parent=0 // pred_fallthru
    _
  // Predicated region
  $region6: #{neuralistica_forward.1} parent=0 // pred_check
    _
  $region7: #{neuralistica_forward.1} parent=0 // pred_check_branch
    %15 = sbr.rel (0) target = $region9
  $region8: #{neuralistica_forward.1} parent=0 // pred_region
    _
  $region9: #{neuralistica_forward.1} parent=0 // pred_fallthru
    _
  // Predicated region
  $region10: #{neuralistica_forward.1} parent=0 // pred_check
    _
  $region11: #{neuralistica_forward.1} parent=0 // pred_check_branch
    %17 = sbr.rel (0) target = $region13
  $region12: #{neuralistica_forward.1} parent=0 // pred_region
    _
  $region13: #{neuralistica_forward.1} parent=0 // pred_fallthru
    _
  // Predicated region
  $region14: #{neuralistica_forward.1} parent=0 // pred_check
    _
  $region15: #{neuralistica_forward.1} parent=0 // pred_check_branch
    %19 = sbr.rel (0) target = $region17
  $region16: #{neuralistica_forward.1} parent=0 // pred_region
    _
  $region17: #{neuralistica_forward.1} parent=0 // pred_fallthru
    _
  // Predicated region
  $region18: #{neuralistica_forward.1} parent=0 // pred_check
    _
  $region19: #{neuralistica_forward.1} parent=0 // pred_check_branch
    %21 = sbr.rel (0) target = $region21
  $region20: #{neuralistica_forward.1} parent=0 // pred_region
    _
  $region21: #{neuralistica_forward.1} parent=0 // pred_fallthru
    _
  // Predicated region
  $region22: #{neuralistica_forward.1} parent=0 // pred_check
    _
  $region23: #{neuralistica_forward.1} parent=0 // pred_check_branch
    %23 = sbr.rel (0) target = $region25
  $region24: #{neuralistica_forward.1} parent=0 // pred_region
    _
  $region25: #{neuralistica_forward.1} parent=0 // pred_fallthru
    _
  // Predicated region
  $region26: #{neuralistica_forward.1} parent=0 // pred_check
    _
  $region27: #{neuralistica_forward.1} parent=0 // pred_check_branch
    %25 = sbr.rel (0) target = $region29
  $region28: #{neuralistica_forward.1} parent=0 // pred_region
    _
  $region29: #{neuralistica_forward.1} parent=0 // pred_fallthru
    _
  %v27 = vld [vmem:[%s0] sm:$0xf]
  %v28 = vld [vmem:[%s0 + $0x4] sm:$0xf]
  %v29 = vld [vmem:[%s0 + $0x8] sm:$0xf]
  %v30 = vld [vmem:[%s0 + $0xc] sm:$0xf]
  %v31 = vld [vmem:[%s0 + $0x10] sm:$0xf]
  %v32 = vld [vmem:[%s0 + $0x14] sm:$0xf]
  %v33 = vld [vmem:[%s0 + $0x18] sm:$0xf]
  %v34 = vld [vmem:[%s0 + $0x1c] sm:$0xf]
  %v35 = vld [vmem:[%s0 + $0x20] sm:$0xf]
  %v36 = vld [vmem:[%s0 + $0x24] sm:$0xf]
  %v37 = vld [vmem:[%s1] sm:$0xf]
  %v38 = vld [vmem:[%s1 + $0x4] sm:$0xf]
  %v39 = vld [vmem:[%s1 + $0x8] sm:$0xf]
  %v40 = vld [vmem:[%s1 + $0xc] sm:$0xf]
  %v41 = vld [vmem:[%s1 + $0x10] sm:$0xf]
  %v42 = vld [vmem:[%s1 + $0x14] sm:$0xf]
  %v43 = vld [vmem:[%s1 + $0x18] sm:$0xf]
  %v44 = vld [vmem:[%s1 + $0x1c] sm:$0xf]
  %v45 = vld [vmem:[%s1 + $0x20] sm:$0xf]
  %v46 = vld [vmem:[%s1 + $0x24] sm:$0xf]
  %v47 = vld [vmem:[%s1 + $0x28] sm:$0xf]
  %v48 = vld [vmem:[%s1 + $0x2c] sm:$0xf]
  %v49 = vld [vmem:[%s1 + $0x30] sm:$0xf]
  %v50 = vld [vmem:[%s1 + $0x34] sm:$0xf]
  %v51 = vld [vmem:[%s1 + $0x38] sm:$0xf]
  %v52 = vld [vmem:[%s1 + $0x3c] sm:$0xf]
  %v53 = vld [vmem:[%s2] sm:$0xff]
  %v54 = vld [vmem:[%s2 + $0x8] sm:$0xff]
  %v55 = vld [vmem:[%s2 + $0x10] sm:$0xff]
  %v56 = vld [vmem:[%s2 + $0x18] sm:$0xff]
  %v57 = vld [vmem:[%s2 + $0x20] sm:$0xff]
  %v58 = vld [vmem:[%s2 + $0x28] sm:$0xff]
  %v59 = vld [vmem:[%s2 + $0x30] sm:$0xff]
  %v60 = vld [vmem:[%s2 + $0x38] sm:$0xff]
  %v61 = vld [vmem:[%s2 + $0x40] sm:$0xff]
  %v62 = vld [vmem:[%s2 + $0x48] sm:$0xff]
  %v63 = vld [vmem:[%s2 + $0x50] sm:$0xff]
  %v64 = vld [vmem:[%s2 + $0x58] sm:$0xff]
  %v65 = vld [vmem:[%s2 + $0x60] sm:$0xff]
  %v66 = vld [vmem:[%s2 + $0x68] sm:$0xff]
  %v67 = vld [vmem:[%s2 + $0x70] sm:$0xff]
  %v68 = vld [vmem:[%s2 + $0x78] sm:$0xff]
  %70 = vset.pattern.permute.xlu0 0
  %71 = vperm.xlu0 %70, %v53
  %v72 = vpop.permute.xlu0 %71
  %75 = vset.pattern.permute.xlu0 0
  %76 = vperm.xlu0 %75, %v54
  %v77 = vpop.permute.xlu0 %76
  %80 = vset.pattern.permute.xlu0 0
  %81 = vperm.xlu0 %80, %v55
  %v82 = vpop.permute.xlu0 %81
  %85 = vset.pattern.permute.xlu0 0
  %86 = vperm.xlu0 %85, %v56
  %v87 = vpop.permute.xlu0 %86
  %90 = vset.pattern.permute.xlu0 0
  %91 = vperm.xlu0 %90, %v57
  %v92 = vpop.permute.xlu0 %91
  %95 = vset.pattern.permute.xlu0 0
  %96 = vperm.xlu0 %95, %v58
  %v97 = vpop.permute.xlu0 %96
  %100 = vset.pattern.permute.xlu0 0
  %101 = vperm.xlu0 %100, %v59
  %v102 = vpop.permute.xlu0 %101
  %105 = vset.pattern.permute.xlu0 0
  %106 = vperm.xlu0 %105, %v60
  %v107 = vpop.permute.xlu0 %106
  %110 = vset.pattern.permute.xlu0 0
  %111 = vperm.xlu0 %110, %v61
  %v112 = vpop.permute.xlu0 %111
  %115 = vset.pattern.permute.xlu0 0
  %116 = vperm.xlu0 %115, %v62
  %v117 = vpop.permute.xlu0 %116
  %120 = vset.pattern.permute.xlu0 0
  %121 = vperm.xlu0 %120, %v63
  %v122 = vpop.permute.xlu0 %121
  %125 = vset.pattern.permute.xlu0 0
  %126 = vperm.xlu0 %125, %v64
  %v127 = vpop.permute.xlu0 %126
  %130 = vset.pattern.permute.xlu0 0
  %131 = vperm.xlu0 %130, %v65
  %v132 = vpop.permute.xlu0 %131
  %135 = vset.pattern.permute.xlu0 0
  %136 = vperm.xlu0 %135, %v66
  %v137 = vpop.permute.xlu0 %136
  %140 = vset.pattern.permute.xlu0 0
  %141 = vperm.xlu0 %140, %v67
  %v142 = vpop.permute.xlu0 %141
  %145 = vset.pattern.permute.xlu0 0
  %146 = vperm.xlu0 %145, %v68
  %v147 = vpop.permute.xlu0 %146
  %v165 = vunpack.c.l.b16 %v37
  %v166 = vunpack.c.l.b16 %v38
  %v167 = vunpack.c.l.b16 %v39
  %v168 = vunpack.c.l.b16 %v40
  %v169 = vunpack.c.l.b16 %v41
  %v170 = vunpack.c.l.b16 %v42
  %v171 = vunpack.c.l.b16 %v43
  %v172 = vunpack.c.l.b16 %v44
  %v173 = vunpack.c.l.b16 %v45
  %v174 = vunpack.c.l.b16 %v46
  %v175 = vunpack.c.l.b16 %v47
  %v176 = vunpack.c.l.b16 %v48
  %v177 = vunpack.c.l.b16 %v49
  %v178 = vunpack.c.l.b16 %v50
  %v179 = vunpack.c.l.b16 %v51
  %v180 = vunpack.c.l.b16 %v52
  %v181 = vpack.c.b16 %v166, %v165
  %v182 = vpack.c.b16 %v168, %v167
  %v183 = vpack.c.b16 %v170, %v169
  %v184 = vpack.c.b16 %v172, %v171
  %v185 = vpack.c.b16 %v174, %v173
  %v186 = vpack.c.b16 %v176, %v175
  %v187 = vpack.c.b16 %v178, %v177
  %v188 = vpack.c.b16 %v180, %v179
  %v199 = vunpack.c.l.b16 %v27
  %v200 = vunpack.c.l.b16 %v28
  %v201 = vunpack.c.l.b16 %v29
  %v202 = vunpack.c.l.b16 %v30
  %v203 = vunpack.c.l.b16 %v31
  %v204 = vunpack.c.l.b16 %v32
  %v205 = vunpack.c.l.b16 %v33
  %v206 = vunpack.c.l.b16 %v34
  %v207 = vunpack.c.l.b16 %v35
  %v208 = vunpack.c.l.b16 %v36
  %v209 = vpack.c.b16 %v200, %v199
  %v210 = vpack.c.b16 %v202, %v201
  %v211 = vpack.c.b16 %v204, %v203
  %v212 = vpack.c.b16 %v206, %v205
  %v213 = vpack.c.b16 %v208, %v207
  %vm219 = vcmask 654336
  %v221 = vsel %vm219, %v181, 0
  %v224 = vsel %vm219, %v182, 0
  %v227 = vsel %vm219, %v183, 0
  %v230 = vsel %vm219, %v184, 0
  %v233 = vsel %vm219, %v185, 0
  %v236 = vsel %vm219, %v186, 0
  %v239 = vsel %vm219, %v187, 0
  %v242 = vsel %vm219, %v188, 0
  %244 = vmatprep.subr.bf16.mxu0 0
  %245 = vmatpush1.bf16.msra.mxu0 0
  %246 = vmatprep.subr.bf16.mxu0 0
  %247 = vmatpush1.bf16.msra.mxu0 0
  %248 = vmatprep.subr.bf16.mxu0 0
  %249 = vmatpush1.bf16.msra.mxu0 0
  %250 = vmatprep.subr.bf16.mxu0 0
  %251 = vmatpush1.bf16.msra.mxu0 %v213
  %252 = vmatprep.subr.bf16.mxu0 0
  %253 = vmatpush1.bf16.msra.mxu0 %v212
  %254 = vmatprep.subr.bf16.mxu0 0
  %255 = vmatpush1.bf16.msra.mxu0 %v211
  %256 = vmatprep.subr.bf16.mxu0 0
  %257 = vmatpush1.bf16.msra.mxu0 %v210
  %258 = vmatprep.subr.bf16.mxu0 0
  %259 = vmatpush1.bf16.msra.mxu0 %v209
  %260 = vmatprep.subr.bf16.mxu0 0
  %261 = vmatpush2.bf16.msra.mxu0 0
  %262 = vmatprep.subr.bf16.mxu0 0
  %263 = vmatpush2.bf16.msra.mxu0 0
  %264 = vmatprep.subr.bf16.mxu0 0
  %265 = vmatpush2.bf16.msra.mxu0 0
  %266 = vmatprep.subr.bf16.mxu0 0
  %267 = vmatpush2.bf16.msra.mxu0 0
  %268 = vmatprep.subr.bf16.mxu0 0
  %269 = vmatpush2.bf16.msra.mxu0 0
  %270 = vmatprep.subr.bf16.mxu0 0
  %271 = vmatpush2.bf16.msra.mxu0 0
  %272 = vmatprep.subr.bf16.mxu0 0
  %273 = vmatpush2.bf16.msra.mxu0 0
  %274 = vmatprep.subr.bf16.mxu0 0
  %275 = vmatpush2.bf16.msra.mxu0 0
  %276 = vmatprep.mubr.bf16.mxu0 0
  %277 = vmatmul.mubr.bf16.gmra.mxu0 %v221
  %v278 = vpop.f32.mrf.mxu0
  %v279 = vadd.f32 %v72, %v278
  %v280 = vpop.f32.mrf.mxu0
  %v281 = vpop.f32.mrf.mxu0
  %v282 = vadd.f32 %v77, %v281
  %v283 = vpop.f32.mrf.mxu0
  %284 = vmatprep.mubr.bf16.mxu0 0
  %285 = vmatmul.mubr.bf16.gmra.mxu0 %v224
  %v286 = vpop.f32.mrf.mxu0
  %v287 = vadd.f32 %v82, %v286
  %v288 = vpop.f32.mrf.mxu0
  %v289 = vpop.f32.mrf.mxu0
  %v290 = vadd.f32 %v87, %v289
  %v291 = vpop.f32.mrf.mxu0
  %292 = vmatprep.mubr.bf16.mxu0 0
  %293 = vmatmul.mubr.bf16.gmra.mxu0 %v227
  %v294 = vpop.f32.mrf.mxu0
  %v295 = vadd.f32 %v92, %v294
  %v296 = vpop.f32.mrf.mxu0
  %v297 = vpop.f32.mrf.mxu0
  %v298 = vadd.f32 %v97, %v297
  %v299 = vpop.f32.mrf.mxu0
  %300 = vmatprep.mubr.bf16.mxu0 0
  %301 = vmatmul.mubr.bf16.gmra.mxu0 %v230
  %v302 = vpop.f32.mrf.mxu0
  %v303 = vadd.f32 %v102, %v302
  %v304 = vpop.f32.mrf.mxu0
  %v305 = vpop.f32.mrf.mxu0
  %v306 = vadd.f32 %v107, %v305
  %v307 = vpop.f32.mrf.mxu0
  %308 = vmatprep.mubr.bf16.mxu0 0
  %309 = vmatmul.mubr.bf16.gmra.mxu0 %v233
  %v310 = vpop.f32.mrf.mxu0
  %v311 = vadd.f32 %v112, %v310
  %v312 = vpop.f32.mrf.mxu0
  %v313 = vpop.f32.mrf.mxu0
  %v314 = vadd.f32 %v117, %v313
  %v315 = vpop.f32.mrf.mxu0
  %316 = vmatprep.mubr.bf16.mxu0 0
  %317 = vmatmul.mubr.bf16.gmra.mxu0 %v236
  %v318 = vpop.f32.mrf.mxu0
  %v319 = vadd.f32 %v122, %v318
  %v320 = vpop.f32.mrf.mxu0
  %v321 = vpop.f32.mrf.mxu0
  %v322 = vadd.f32 %v127, %v321
  %v323 = vpop.f32.mrf.mxu0
  %324 = vmatprep.mubr.bf16.mxu0 0
  %325 = vmatmul.mubr.bf16.gmra.mxu0 %v239
  %v326 = vpop.f32.mrf.mxu0
  %v327 = vadd.f32 %v132, %v326
  %v328 = vpop.f32.mrf.mxu0
  %v329 = vpop.f32.mrf.mxu0
  %v330 = vadd.f32 %v137, %v329
  %v331 = vpop.f32.mrf.mxu0
  %332 = vmatprep.mubr.bf16.mxu0 0
  %333 = vmatmul.mubr.bf16.gmra.mxu0 %v242
  %v334 = vpop.f32.mrf.mxu0
  %v335 = vadd.f32 %v142, %v334
  %v336 = vpop.f32.mrf.mxu0
  %v337 = vpop.f32.mrf.mxu0
  %v338 = vadd.f32 %v147, %v337
  %v339 = vpop.f32.mrf.mxu0
  %340 = vdwg.mxu0
  %v341 = vmax.f32 %v279, 0.0
  %v342 = vmax.f32 %v282, 0.0
  %v343 = vmax.f32 %v287, 0.0
  %v344 = vmax.f32 %v290, 0.0
  %v345 = vmax.f32 %v295, 0.0
  %v346 = vmax.f32 %v298, 0.0
  %v347 = vmax.f32 %v303, 0.0
  %v348 = vmax.f32 %v306, 0.0
  %v349 = vmax.f32 %v311, 0.0
  %v350 = vmax.f32 %v314, 0.0
  %v351 = vmax.f32 %v319, 0.0
  %v352 = vmax.f32 %v322, 0.0
  %v353 = vmax.f32 %v327, 0.0
  %v354 = vmax.f32 %v330, 0.0
  %v355 = vmax.f32 %v335, 0.0
  %v356 = vmax.f32 %v338, 0.0
  %v357 = vpack.c.bf16 %v342, %v341
  %v358 = vpack.c.bf16 %v344, %v343
  %v359 = vpack.c.bf16 %v346, %v345
  %v360 = vpack.c.bf16 %v348, %v347
  %v361 = vpack.c.bf16 %v350, %v349
  %v362 = vpack.c.bf16 %v352, %v351
  %v363 = vpack.c.bf16 %v354, %v353
  %v364 = vpack.c.bf16 %v356, %v355
  %v365 = vld [vmem:[%s3] sm:$0xf]
  %v366 = vld [vmem:[%s3 + $0x4] sm:$0xf]
  %v367 = vld [vmem:[%s3 + $0x8] sm:$0xf]
  %v368 = vld [vmem:[%s3 + $0xc] sm:$0xf]
  %v369 = vld [vmem:[%s3 + $0x10] sm:$0xf]
  %v370 = vld [vmem:[%s3 + $0x14] sm:$0xf]
  %v371 = vld [vmem:[%s3 + $0x18] sm:$0xf]
  %v372 = vld [vmem:[%s3 + $0x1c] sm:$0xf]
  %v373 = vld [vmem:[%s3 + $0x20] sm:$0xf]
  %v374 = vld [vmem:[%s3 + $0x24] sm:$0xf]
  %v375 = vld [vmem:[%s3 + $0x28] sm:$0xf]
  %v376 = vld [vmem:[%s3 + $0x2c] sm:$0xf]
  %v377 = vld [vmem:[%s3 + $0x30] sm:$0xf]
  %v378 = vld [vmem:[%s3 + $0x34] sm:$0xf]
  %v379 = vld [vmem:[%s3 + $0x38] sm:$0xf]
  %v380 = vld [vmem:[%s3 + $0x3c] sm:$0xf]
  %v381 = vld [vmem:[%s4] sm:$0xff]
  %v382 = vld [vmem:[%s4 + $0x8] sm:$0xff]
  %v383 = vld [vmem:[%s4 + $0x10] sm:$0xff]
  %v384 = vld [vmem:[%s4 + $0x18] sm:$0xff]
  %v385 = vld [vmem:[%s4 + $0x20] sm:$0xff]
  %v386 = vld [vmem:[%s4 + $0x28] sm:$0xff]
  %v387 = vld [vmem:[%s4 + $0x30] sm:$0xff]
  %v388 = vld [vmem:[%s4 + $0x38] sm:$0xff]
  %v389 = vld [vmem:[%s4 + $0x40] sm:$0xff]
  %v390 = vld [vmem:[%s4 + $0x48] sm:$0xff]
  %v391 = vld [vmem:[%s4 + $0x50] sm:$0xff]
  %v392 = vld [vmem:[%s4 + $0x58] sm:$0xff]
  %v393 = vld [vmem:[%s4 + $0x60] sm:$0xff]
  %v394 = vld [vmem:[%s4 + $0x68] sm:$0xff]
  %v395 = vld [vmem:[%s4 + $0x70] sm:$0xff]
  %v396 = vld [vmem:[%s4 + $0x78] sm:$0xff]
  %398 = vset.pattern.permute.xlu0 0
  %399 = vperm.xlu0 %398, %v381
  %v400 = vpop.permute.xlu0 %399
  %403 = vset.pattern.permute.xlu0 0
  %404 = vperm.xlu0 %403, %v382
  %v405 = vpop.permute.xlu0 %404
  %408 = vset.pattern.permute.xlu0 0
  %409 = vperm.xlu0 %408, %v383
  %v410 = vpop.permute.xlu0 %409
  %413 = vset.pattern.permute.xlu0 0
  %414 = vperm.xlu0 %413, %v384
  %v415 = vpop.permute.xlu0 %414
  %418 = vset.pattern.permute.xlu0 0
  %419 = vperm.xlu0 %418, %v385
  %v420 = vpop.permute.xlu0 %419
  %423 = vset.pattern.permute.xlu0 0
  %424 = vperm.xlu0 %423, %v386
  %v425 = vpop.permute.xlu0 %424
  %428 = vset.pattern.permute.xlu0 0
  %429 = vperm.xlu0 %428, %v387
  %v430 = vpop.permute.xlu0 %429
  %433 = vset.pattern.permute.xlu0 0
  %434 = vperm.xlu0 %433, %v388
  %v435 = vpop.permute.xlu0 %434
  %438 = vset.pattern.permute.xlu0 0
  %439 = vperm.xlu0 %438, %v389
  %v440 = vpop.permute.xlu0 %439
  %443 = vset.pattern.permute.xlu0 0
  %444 = vperm.xlu0 %443, %v390
  %v445 = vpop.permute.xlu0 %444
  %448 = vset.pattern.permute.xlu0 0
  %449 = vperm.xlu0 %448, %v391
  %v450 = vpop.permute.xlu0 %449
  %453 = vset.pattern.permute.xlu0 0
  %454 = vperm.xlu0 %453, %v392
  %v455 = vpop.permute.xlu0 %454
  %458 = vset.pattern.permute.xlu0 0
  %459 = vperm.xlu0 %458, %v393
  %v460 = vpop.permute.xlu0 %459
  %463 = vset.pattern.permute.xlu0 0
  %464 = vperm.xlu0 %463, %v394
  %v465 = vpop.permute.xlu0 %464
  %468 = vset.pattern.permute.xlu0 0
  %469 = vperm.xlu0 %468, %v395
  %v470 = vpop.permute.xlu0 %469
  %473 = vset.pattern.permute.xlu0 0
  %474 = vperm.xlu0 %473, %v396
  %v475 = vpop.permute.xlu0 %474
  %v493 = vunpack.c.l.b16 %v365
  %v494 = vunpack.c.l.b16 %v366
  %v495 = vunpack.c.l.b16 %v367
  %v496 = vunpack.c.l.b16 %v368
  %v497 = vunpack.c.l.b16 %v369
  %v498 = vunpack.c.l.b16 %v370
  %v499 = vunpack.c.l.b16 %v371
  %v500 = vunpack.c.l.b16 %v372
  %v501 = vunpack.c.l.b16 %v373
  %v502 = vunpack.c.l.b16 %v374
  %v503 = vunpack.c.l.b16 %v375
  %v504 = vunpack.c.l.b16 %v376
  %v505 = vunpack.c.l.b16 %v377
  %v506 = vunpack.c.l.b16 %v378
  %v507 = vunpack.c.l.b16 %v379
  %v508 = vunpack.c.l.b16 %v380
  %v509 = vpack.c.b16 %v494, %v493
  %v510 = vpack.c.b16 %v496, %v495
  %v511 = vpack.c.b16 %v498, %v497
  %v512 = vpack.c.b16 %v500, %v499
  %v513 = vpack.c.b16 %v502, %v501
  %v514 = vpack.c.b16 %v504, %v503
  %v515 = vpack.c.b16 %v506, %v505
  %v516 = vpack.c.b16 %v508, %v507
  %525 = vmatprep.subr.bf16.mxu0 0
  %526 = vmatpush1.bf16.msra.mxu0 %v364
  %527 = vmatprep.subr.bf16.mxu0 0
  %528 = vmatpush1.bf16.msra.mxu0 %v363
  %529 = vmatprep.subr.bf16.mxu0 0
  %530 = vmatpush1.bf16.msra.mxu0 %v362
  %531 = vmatprep.subr.bf16.mxu0 0
  %532 = vmatpush1.bf16.msra.mxu0 %v361
  %533 = vmatprep.subr.bf16.mxu0 0
  %534 = vmatpush1.bf16.msra.mxu0 %v360
  %535 = vmatprep.subr.bf16.mxu0 0
  %536 = vmatpush1.bf16.msra.mxu0 %v359
  %537 = vmatprep.subr.bf16.mxu0 0
  %538 = vmatpush1.bf16.msra.mxu0 %v358
  %539 = vmatprep.subr.bf16.mxu0 0
  %540 = vmatpush1.bf16.msra.mxu0 %v357
  %541 = vmatprep.subr.bf16.mxu0 0
  %542 = vmatpush2.bf16.msra.mxu0 0
  %543 = vmatprep.subr.bf16.mxu0 0
  %544 = vmatpush2.bf16.msra.mxu0 0
  %545 = vmatprep.subr.bf16.mxu0 0
  %546 = vmatpush2.bf16.msra.mxu0 0
  %547 = vmatprep.subr.bf16.mxu0 0
  %548 = vmatpush2.bf16.msra.mxu0 0
  %549 = vmatprep.subr.bf16.mxu0 0
  %550 = vmatpush2.bf16.msra.mxu0 0
  %551 = vmatprep.subr.bf16.mxu0 0
  %552 = vmatpush2.bf16.msra.mxu0 0
  %553 = vmatprep.subr.bf16.mxu0 0
  %554 = vmatpush2.bf16.msra.mxu0 0
  %555 = vmatprep.subr.bf16.mxu0 0
  %556 = vmatpush2.bf16.msra.mxu0 0
  %557 = vmatprep.mubr.bf16.mxu0 0
  %558 = vmatmul.mubr.bf16.gmra.mxu0 %v509
  %v559 = vpop.f32.mrf.mxu0
  %v560 = vadd.f32 %v400, %v559
  %v561 = vpop.f32.mrf.mxu0
  %v562 = vpop.f32.mrf.mxu0
  %v563 = vadd.f32 %v405, %v562
  %v564 = vpop.f32.mrf.mxu0
  %565 = vmatprep.mubr.bf16.mxu0 0
  %566 = vmatmul.mubr.bf16.gmra.mxu0 %v510
  %v567 = vpop.f32.mrf.mxu0
  %v568 = vadd.f32 %v410, %v567
  %v569 = vpop.f32.mrf.mxu0
  %v570 = vpop.f32.mrf.mxu0
  %v571 = vadd.f32 %v415, %v570
  %v572 = vpop.f32.mrf.mxu0
  %573 = vmatprep.mubr.bf16.mxu0 0
  %574 = vmatmul.mubr.bf16.gmra.mxu0 %v511
  %v575 = vpop.f32.mrf.mxu0
  %v576 = vadd.f32 %v420, %v575
  %v577 = vpop.f32.mrf.mxu0
  %v578 = vpop.f32.mrf.mxu0
  %v579 = vadd.f32 %v425, %v578
  %v580 = vpop.f32.mrf.mxu0
  %581 = vmatprep.mubr.bf16.mxu0 0
  %582 = vmatmul.mubr.bf16.gmra.mxu0 %v512
  %v583 = vpop.f32.mrf.mxu0
  %v584 = vadd.f32 %v430, %v583
  %v585 = vpop.f32.mrf.mxu0
  %v586 = vpop.f32.mrf.mxu0
  %v587 = vadd.f32 %v435, %v586
  %v588 = vpop.f32.mrf.mxu0
  %589 = vmatprep.mubr.bf16.mxu0 0
  %590 = vmatmul.mubr.bf16.gmra.mxu0 %v513
  %v591 = vpop.f32.mrf.mxu0
  %v592 = vadd.f32 %v440, %v591
  %v593 = vpop.f32.mrf.mxu0
  %v594 = vpop.f32.mrf.mxu0
  %v595 = vadd.f32 %v445, %v594
  %v596 = vpop.f32.mrf.mxu0
  %597 = vmatprep.mubr.bf16.mxu0 0
  %598 = vmatmul.mubr.bf16.gmra.mxu0 %v514
  %v599 = vpop.f32.mrf.mxu0
  %v600 = vadd.f32 %v450, %v599
  %v601 = vpop.f32.mrf.mxu0
  %v602 = vpop.f32.mrf.mxu0
  %v603 = vadd.f32 %v455, %v602
  %v604 = vpop.f32.mrf.mxu0
  %605 = vmatprep.mubr.bf16.mxu0 0
  %606 = vmatmul.mubr.bf16.gmra.mxu0 %v515
  %v607 = vpop.f32.mrf.mxu0
  %v608 = vadd.f32 %v460, %v607
  %v609 = vpop.f32.mrf.mxu0
  %v610 = vpop.f32.mrf.mxu0
  %v611 = vadd.f32 %v465, %v610
  %v612 = vpop.f32.mrf.mxu0
  %613 = vmatprep.mubr.bf16.mxu0 0
  %614 = vmatmul.mubr.bf16.gmra.mxu0 %v516
  %v615 = vpop.f32.mrf.mxu0
  %v616 = vadd.f32 %v470, %v615
  %v617 = vpop.f32.mrf.mxu0
  %v618 = vpop.f32.mrf.mxu0
  %v619 = vadd.f32 %v475, %v618
  %v620 = vpop.f32.mrf.mxu0
  %621 = vdwg.mxu0
  %v622 = vmax.f32 %v560, 0.0
  %v623 = vmax.f32 %v563, 0.0
  %v624 = vmax.f32 %v568, 0.0
  %v625 = vmax.f32 %v571, 0.0
  %v626 = vmax.f32 %v576, 0.0
  %v627 = vmax.f32 %v579, 0.0
  %v628 = vmax.f32 %v584, 0.0
  %v629 = vmax.f32 %v587, 0.0
  %v630 = vmax.f32 %v592, 0.0
  %v631 = vmax.f32 %v595, 0.0
  %v632 = vmax.f32 %v600, 0.0
  %v633 = vmax.f32 %v603, 0.0
  %v634 = vmax.f32 %v608, 0.0
  %v635 = vmax.f32 %v611, 0.0
  %v636 = vmax.f32 %v616, 0.0
  %v637 = vmax.f32 %v619, 0.0
  %v638 = vpack.c.bf16 %v623, %v622
  %v639 = vpack.c.bf16 %v625, %v624
  %v640 = vpack.c.bf16 %v627, %v626
  %v641 = vpack.c.bf16 %v629, %v628
  %v642 = vpack.c.bf16 %v631, %v630
  %v643 = vpack.c.bf16 %v633, %v632
  %v644 = vpack.c.bf16 %v635, %v634
  %v645 = vpack.c.bf16 %v637, %v636
  %s646 = scalar_lea.vmem %s3, 64
  %v647 = vld [vmem:[%s646] sm:$0xf]
  %v648 = vld [vmem:[%s646 + $0x4] sm:$0xf]
  %v649 = vld [vmem:[%s646 + $0x8] sm:$0xf]
  %v650 = vld [vmem:[%s646 + $0xc] sm:$0xf]
  %v651 = vld [vmem:[%s646 + $0x10] sm:$0xf]
  %v652 = vld [vmem:[%s646 + $0x14] sm:$0xf]
  %v653 = vld [vmem:[%s646 + $0x18] sm:$0xf]
  %v654 = vld [vmem:[%s646 + $0x1c] sm:$0xf]
  %v655 = vld [vmem:[%s646 + $0x20] sm:$0xf]
  %v656 = vld [vmem:[%s646 + $0x24] sm:$0xf]
  %v657 = vld [vmem:[%s646 + $0x28] sm:$0xf]
  %v658 = vld [vmem:[%s646 + $0x2c] sm:$0xf]
  %v659 = vld [vmem:[%s646 + $0x30] sm:$0xf]
  %v660 = vld [vmem:[%s646 + $0x34] sm:$0xf]
  %v661 = vld [vmem:[%s646 + $0x38] sm:$0xf]
  %v662 = vld [vmem:[%s646 + $0x3c] sm:$0xf]
  %s663 = scalar_lea.vmem %s4, 128
  %v664 = vld [vmem:[%s663] sm:$0xff]
  %v665 = vld [vmem:[%s663 + $0x8] sm:$0xff]
  %v666 = vld [vmem:[%s663 + $0x10] sm:$0xff]
  %v667 = vld [vmem:[%s663 + $0x18] sm:$0xff]
  %v668 = vld [vmem:[%s663 + $0x20] sm:$0xff]
  %v669 = vld [vmem:[%s663 + $0x28] sm:$0xff]
  %v670 = vld [vmem:[%s663 + $0x30] sm:$0xff]
  %v671 = vld [vmem:[%s663 + $0x38] sm:$0xff]
  %v672 = vld [vmem:[%s663 + $0x40] sm:$0xff]
  %v673 = vld [vmem:[%s663 + $0x48] sm:$0xff]
  %v674 = vld [vmem:[%s663 + $0x50] sm:$0xff]
  %v675 = vld [vmem:[%s663 + $0x58] sm:$0xff]
  %v676 = vld [vmem:[%s663 + $0x60] sm:$0xff]
  %v677 = vld [vmem:[%s663 + $0x68] sm:$0xff]
  %v678 = vld [vmem:[%s663 + $0x70] sm:$0xff]
  %v679 = vld [vmem:[%s663 + $0x78] sm:$0xff]
  %681 = vset.pattern.permute.xlu0 0
  %682 = vperm.xlu0 %681, %v664
  %v683 = vpop.permute.xlu0 %682
  %686 = vset.pattern.permute.xlu0 0
  %687 = vperm.xlu0 %686, %v665
  %v688 = vpop.permute.xlu0 %687
  %691 = vset.pattern.permute.xlu0 0
  %692 = vperm.xlu0 %691, %v666
  %v693 = vpop.permute.xlu0 %692
  %696 = vset.pattern.permute.xlu0 0
  %697 = vperm.xlu0 %696, %v667
  %v698 = vpop.permute.xlu0 %697
  %701 = vset.pattern.permute.xlu0 0
  %702 = vperm.xlu0 %701, %v668
  %v703 = vpop.permute.xlu0 %702
  %706 = vset.pattern.permute.xlu0 0
  %707 = vperm.xlu0 %706, %v669
  %v708 = vpop.permute.xlu0 %707
  %711 = vset.pattern.permute.xlu0 0
  %712 = vperm.xlu0 %711, %v670
  %v713 = vpop.permute.xlu0 %712
  %716 = vset.pattern.permute.xlu0 0
  %717 = vperm.xlu0 %716, %v671
  %v718 = vpop.permute.xlu0 %717
  %721 = vset.pattern.permute.xlu0 0
  %722 = vperm.xlu0 %721, %v672
  %v723 = vpop.permute.xlu0 %722
  %726 = vset.pattern.permute.xlu0 0
  %727 = vperm.xlu0 %726, %v673
  %v728 = vpop.permute.xlu0 %727
  %731 = vset.pattern.permute.xlu0 0
  %732 = vperm.xlu0 %731, %v674
  %v733 = vpop.permute.xlu0 %732
  %736 = vset.pattern.permute.xlu0 0
  %737 = vperm.xlu0 %736, %v675
  %v738 = vpop.permute.xlu0 %737
  %741 = vset.pattern.permute.xlu0 0
  %742 = vperm.xlu0 %741, %v676
  %v743 = vpop.permute.xlu0 %742
  %746 = vset.pattern.permute.xlu0 0
  %747 = vperm.xlu0 %746, %v677
  %v748 = vpop.permute.xlu0 %747
  %751 = vset.pattern.permute.xlu0 0
  %752 = vperm.xlu0 %751, %v678
  %v753 = vpop.permute.xlu0 %752
  %756 = vset.pattern.permute.xlu0 0
  %757 = vperm.xlu0 %756, %v679
  %v758 = vpop.permute.xlu0 %757
  %v776 = vunpack.c.l.b16 %v647
  %v777 = vunpack.c.l.b16 %v648
  %v778 = vunpack.c.l.b16 %v649
  %v779 = vunpack.c.l.b16 %v650
  %v780 = vunpack.c.l.b16 %v651
  %v781 = vunpack.c.l.b16 %v652
  %v782 = vunpack.c.l.b16 %v653
  %v783 = vunpack.c.l.b16 %v654
  %v784 = vunpack.c.l.b16 %v655
  %v785 = vunpack.c.l.b16 %v656
  %v786 = vunpack.c.l.b16 %v657
  %v787 = vunpack.c.l.b16 %v658
  %v788 = vunpack.c.l.b16 %v659
  %v789 = vunpack.c.l.b16 %v660
  %v790 = vunpack.c.l.b16 %v661
  %v791 = vunpack.c.l.b16 %v662
  %v792 = vpack.c.b16 %v777, %v776
  %v793 = vpack.c.b16 %v779, %v778
  %v794 = vpack.c.b16 %v781, %v780
  %v795 = vpack.c.b16 %v783, %v782
  %v796 = vpack.c.b16 %v785, %v784
  %v797 = vpack.c.b16 %v787, %v786
  %v798 = vpack.c.b16 %v789, %v788
  %v799 = vpack.c.b16 %v791, %v790
  %808 = vmatprep.subr.bf16.mxu0 0
  %809 = vmatpush1.bf16.msra.mxu0 %v645
  %810 = vmatprep.subr.bf16.mxu0 0
  %811 = vmatpush1.bf16.msra.mxu0 %v644
  %812 = vmatprep.subr.bf16.mxu0 0
  %813 = vmatpush1.bf16.msra.mxu0 %v643
  %814 = vmatprep.subr.bf16.mxu0 0
  %815 = vmatpush1.bf16.msra.mxu0 %v642
  %816 = vmatprep.subr.bf16.mxu0 0
  %817 = vmatpush1.bf16.msra.mxu0 %v641
  %818 = vmatprep.subr.bf16.mxu0 0
  %819 = vmatpush1.bf16.msra.mxu0 %v640
  %820 = vmatprep.subr.bf16.mxu0 0
  %821 = vmatpush1.bf16.msra.mxu0 %v639
  %822 = vmatprep.subr.bf16.mxu0 0
  %823 = vmatpush1.bf16.msra.mxu0 %v638
  %824 = vmatprep.subr.bf16.mxu0 0
  %825 = vmatpush2.bf16.msra.mxu0 0
  %826 = vmatprep.subr.bf16.mxu0 0
  %827 = vmatpush2.bf16.msra.mxu0 0
  %828 = vmatprep.subr.bf16.mxu0 0
  %829 = vmatpush2.bf16.msra.mxu0 0
  %830 = vmatprep.subr.bf16.mxu0 0
  %831 = vmatpush2.bf16.msra.mxu0 0
  %832 = vmatprep.subr.bf16.mxu0 0
  %833 = vmatpush2.bf16.msra.mxu0 0
  %834 = vmatprep.subr.bf16.mxu0 0
  %835 = vmatpush2.bf16.msra.mxu0 0
  %836 = vmatprep.subr.bf16.mxu0 0
  %837 = vmatpush2.bf16.msra.mxu0 0
  %838 = vmatprep.subr.bf16.mxu0 0
  %839 = vmatpush2.bf16.msra.mxu0 0
  %840 = vmatprep.mubr.bf16.mxu0 0
  %841 = vmatmul.mubr.bf16.gmra.mxu0 %v792
  %v842 = vpop.f32.mrf.mxu0
  %v843 = vadd.f32 %v683, %v842
  %v844 = vpop.f32.mrf.mxu0
  %v845 = vpop.f32.mrf.mxu0
  %v846 = vadd.f32 %v688, %v845
  %v847 = vpop.f32.mrf.mxu0
  %848 = vmatprep.mubr.bf16.mxu0 0
  %849 = vmatmul.mubr.bf16.gmra.mxu0 %v793
  %v850 = vpop.f32.mrf.mxu0
  %v851 = vadd.f32 %v693, %v850
  %v852 = vpop.f32.mrf.mxu0
  %v853 = vpop.f32.mrf.mxu0
  %v854 = vadd.f32 %v698, %v853
  %v855 = vpop.f32.mrf.mxu0
  %856 = vmatprep.mubr.bf16.mxu0 0
  %857 = vmatmul.mubr.bf16.gmra.mxu0 %v794
  %v858 = vpop.f32.mrf.mxu0
  %v859 = vadd.f32 %v703, %v858
  %v860 = vpop.f32.mrf.mxu0
  %v861 = vpop.f32.mrf.mxu0
  %v862 = vadd.f32 %v708, %v861
  %v863 = vpop.f32.mrf.mxu0
  %864 = vmatprep.mubr.bf16.mxu0 0
  %865 = vmatmul.mubr.bf16.gmra.mxu0 %v795
  %v866 = vpop.f32.mrf.mxu0
  %v867 = vadd.f32 %v713, %v866
  %v868 = vpop.f32.mrf.mxu0
  %v869 = vpop.f32.mrf.mxu0
  %v870 = vadd.f32 %v718, %v869
  %v871 = vpop.f32.mrf.mxu0
  %872 = vmatprep.mubr.bf16.mxu0 0
  %873 = vmatmul.mubr.bf16.gmra.mxu0 %v796
  %v874 = vpop.f32.mrf.mxu0
  %v875 = vadd.f32 %v723, %v874
  %v876 = vpop.f32.mrf.mxu0
  %v877 = vpop.f32.mrf.mxu0
  %v878 = vadd.f32 %v728, %v877
  %v879 = vpop.f32.mrf.mxu0
  %880 = vmatprep.mubr.bf16.mxu0 0
  %881 = vmatmul.mubr.bf16.gmra.mxu0 %v797
  %v882 = vpop.f32.mrf.mxu0
  %v883 = vadd.f32 %v733, %v882
  %v884 = vpop.f32.mrf.mxu0
  %v885 = vpop.f32.mrf.mxu0
  %v886 = vadd.f32 %v738, %v885
  %v887 = vpop.f32.mrf.mxu0
  %888 = vmatprep.mubr.bf16.mxu0 0
  %889 = vmatmul.mubr.bf16.gmra.mxu0 %v798
  %v890 = vpop.f32.mrf.mxu0
  %v891 = vadd.f32 %v743, %v890
  %v892 = vpop.f32.mrf.mxu0
  %v893 = vpop.f32.mrf.mxu0
  %v894 = vadd.f32 %v748, %v893
  %v895 = vpop.f32.mrf.mxu0
  %896 = vmatprep.mubr.bf16.mxu0 0
  %897 = vmatmul.mubr.bf16.gmra.mxu0 %v799
  %v898 = vpop.f32.mrf.mxu0
  %v899 = vadd.f32 %v753, %v898
  %v900 = vpop.f32.mrf.mxu0
  %v901 = vpop.f32.mrf.mxu0
  %v902 = vadd.f32 %v758, %v901
  %v903 = vpop.f32.mrf.mxu0
  %904 = vdwg.mxu0
  %v905 = vmax.f32 %v843, 0.0
  %v906 = vmax.f32 %v846, 0.0
  %v907 = vmax.f32 %v851, 0.0
  %v908 = vmax.f32 %v854, 0.0
  %v909 = vmax.f32 %v859, 0.0
  %v910 = vmax.f32 %v862, 0.0
  %v911 = vmax.f32 %v867, 0.0
  %v912 = vmax.f32 %v870, 0.0
  %v913 = vmax.f32 %v875, 0.0
  %v914 = vmax.f32 %v878, 0.0
  %v915 = vmax.f32 %v883, 0.0
  %v916 = vmax.f32 %v886, 0.0
  %v917 = vmax.f32 %v891, 0.0
  %v918 = vmax.f32 %v894, 0.0
  %v919 = vmax.f32 %v899, 0.0
  %v920 = vmax.f32 %v902, 0.0
  %v921 = vpack.c.bf16 %v906, %v905
  %v922 = vpack.c.bf16 %v908, %v907
  %v923 = vpack.c.bf16 %v910, %v909
  %v924 = vpack.c.bf16 %v912, %v911
  %v925 = vpack.c.bf16 %v914, %v913
  %v926 = vpack.c.bf16 %v916, %v915
  %v927 = vpack.c.bf16 %v918, %v917
  %v928 = vpack.c.bf16 %v920, %v919
  %s929 = scalar_lea.vmem %s3, 128
  %v930 = vld [vmem:[%s929] sm:$0xf]
  %v931 = vld [vmem:[%s929 + $0x4] sm:$0xf]
  %v932 = vld [vmem:[%s929 + $0x8] sm:$0xf]
  %v933 = vld [vmem:[%s929 + $0xc] sm:$0xf]
  %v934 = vld [vmem:[%s929 + $0x10] sm:$0xf]
  %v935 = vld [vmem:[%s929 + $0x14] sm:$0xf]
  %v936 = vld [vmem:[%s929 + $0x18] sm:$0xf]
  %v937 = vld [vmem:[%s929 + $0x1c] sm:$0xf]
  %v938 = vld [vmem:[%s929 + $0x20] sm:$0xf]
  %v939 = vld [vmem:[%s929 + $0x24] sm:$0xf]
  %v940 = vld [vmem:[%s929 + $0x28] sm:$0xf]
  %v941 = vld [vmem:[%s929 + $0x2c] sm:$0xf]
  %v942 = vld [vmem:[%s929 + $0x30] sm:$0xf]
  %v943 = vld [vmem:[%s929 + $0x34] sm:$0xf]
  %v944 = vld [vmem:[%s929 + $0x38] sm:$0xf]
  %v945 = vld [vmem:[%s929 + $0x3c] sm:$0xf]
  %s946 = scalar_lea.vmem %s4, 256
  %v947 = vld [vmem:[%s946] sm:$0xff]
  %v948 = vld [vmem:[%s946 + $0x8] sm:$0xff]
  %v949 = vld [vmem:[%s946 + $0x10] sm:$0xff]
  %v950 = vld [vmem:[%s946 + $0x18] sm:$0xff]
  %v951 = vld [vmem:[%s946 + $0x20] sm:$0xff]
  %v952 = vld [vmem:[%s946 + $0x28] sm:$0xff]
  %v953 = vld [vmem:[%s946 + $0x30] sm:$0xff]
  %v954 = vld [vmem:[%s946 + $0x38] sm:$0xff]
  %v955 = vld [vmem:[%s946 + $0x40] sm:$0xff]
  %v956 = vld [vmem:[%s946 + $0x48] sm:$0xff]
  %v957 = vld [vmem:[%s946 + $0x50] sm:$0xff]
  %v958 = vld [vmem:[%s946 + $0x58] sm:$0xff]
  %v959 = vld [vmem:[%s946 + $0x60] sm:$0xff]
  %v960 = vld [vmem:[%s946 + $0x68] sm:$0xff]
  %v961 = vld [vmem:[%s946 + $0x70] sm:$0xff]
  %v962 = vld [vmem:[%s946 + $0x78] sm:$0xff]
  %964 = vset.pattern.permute.xlu0 0
  %965 = vperm.xlu0 %964, %v947
  %v966 = vpop.permute.xlu0 %965
  %969 = vset.pattern.permute.xlu0 0
  %970 = vperm.xlu0 %969, %v948
  %v971 = vpop.permute.xlu0 %970
  %974 = vset.pattern.permute.xlu0 0
  %975 = vperm.xlu0 %974, %v949
  %v976 = vpop.permute.xlu0 %975
  %979 = vset.pattern.permute.xlu0 0
  %980 = vperm.xlu0 %979, %v950
  %v981 = vpop.permute.xlu0 %980
  %984 = vset.pattern.permute.xlu0 0
  %985 = vperm.xlu0 %984, %v951
  %v986 = vpop.permute.xlu0 %985
  %989 = vset.pattern.permute.xlu0 0
  %990 = vperm.xlu0 %989, %v952
  %v991 = vpop.permute.xlu0 %990
  %994 = vset.pattern.permute.xlu0 0
  %995 = vperm.xlu0 %994, %v953
  %v996 = vpop.permute.xlu0 %995
  %999 = vset.pattern.permute.xlu0 0
  %1000 = vperm.xlu0 %999, %v954
  %v1001 = vpop.permute.xlu0 %1000
  %1004 = vset.pattern.permute.xlu0 0
  %1005 = vperm.xlu0 %1004, %v955
  %v1006 = vpop.permute.xlu0 %1005
  %1009 = vset.pattern.permute.xlu0 0
  %1010 = vperm.xlu0 %1009, %v956
  %v1011 = vpop.permute.xlu0 %1010
  %1014 = vset.pattern.permute.xlu0 0
  %1015 = vperm.xlu0 %1014, %v957
  %v1016 = vpop.permute.xlu0 %1015
  %1019 = vset.pattern.permute.xlu0 0
  %1020 = vperm.xlu0 %1019, %v958
  %v1021 = vpop.permute.xlu0 %1020
  %1024 = vset.pattern.permute.xlu0 0
  %1025 = vperm.xlu0 %1024, %v959
  %v1026 = vpop.permute.xlu0 %1025
  %1029 = vset.pattern.permute.xlu0 0
  %1030 = vperm.xlu0 %1029, %v960
  %v1031 = vpop.permute.xlu0 %1030
  %1034 = vset.pattern.permute.xlu0 0
  %1035 = vperm.xlu0 %1034, %v961
  %v1036 = vpop.permute.xlu0 %1035
  %1039 = vset.pattern.permute.xlu0 0
  %1040 = vperm.xlu0 %1039, %v962
  %v1041 = vpop.permute.xlu0 %1040
  %v1059 = vunpack.c.l.b16 %v930
  %v1060 = vunpack.c.l.b16 %v931
  %v1061 = vunpack.c.l.b16 %v932
  %v1062 = vunpack.c.l.b16 %v933
  %v1063 = vunpack.c.l.b16 %v934
  %v1064 = vunpack.c.l.b16 %v935
  %v1065 = vunpack.c.l.b16 %v936
  %v1066 = vunpack.c.l.b16 %v937
  %v1067 = vunpack.c.l.b16 %v938
  %v1068 = vunpack.c.l.b16 %v939
  %v1069 = vunpack.c.l.b16 %v940
  %v1070 = vunpack.c.l.b16 %v941
  %v1071 = vunpack.c.l.b16 %v942
  %v1072 = vunpack.c.l.b16 %v943
  %v1073 = vunpack.c.l.b16 %v944
  %v1074 = vunpack.c.l.b16 %v945
  %v1075 = vpack.c.b16 %v1060, %v1059
  %v1076 = vpack.c.b16 %v1062, %v1061
  %v1077 = vpack.c.b16 %v1064, %v1063
  %v1078 = vpack.c.b16 %v1066, %v1065
  %v1079 = vpack.c.b16 %v1068, %v1067
  %v1080 = vpack.c.b16 %v1070, %v1069
  %v1081 = vpack.c.b16 %v1072, %v1071
  %v1082 = vpack.c.b16 %v1074, %v1073
  %1091 = vmatprep.subr.bf16.mxu0 0
  %1092 = vmatpush1.bf16.msra.mxu0 %v928
  %1093 = vmatprep.subr.bf16.mxu0 0
  %1094 = vmatpush1.bf16.msra.mxu0 %v927
  %1095 = vmatprep.subr.bf16.mxu0 0
  %1096 = vmatpush1.bf16.msra.mxu0 %v926
  %1097 = vmatprep.subr.bf16.mxu0 0
  %1098 = vmatpush1.bf16.msra.mxu0 %v925
  %1099 = vmatprep.subr.bf16.mxu0 0
  %1100 = vmatpush1.bf16.msra.mxu0 %v924
  %1101 = vmatprep.subr.bf16.mxu0 0
  %1102 = vmatpush1.bf16.msra.mxu0 %v923
  %1103 = vmatprep.subr.bf16.mxu0 0
  %1104 = vmatpush1.bf16.msra.mxu0 %v922
  %1105 = vmatprep.subr.bf16.mxu0 0
  %1106 = vmatpush1.bf16.msra.mxu0 %v921
  %1107 = vmatprep.subr.bf16.mxu0 0
  %1108 = vmatpush2.bf16.msra.mxu0 0
  %1109 = vmatprep.subr.bf16.mxu0 0
  %1110 = vmatpush2.bf16.msra.mxu0 0
  %1111 = vmatprep.subr.bf16.mxu0 0
  %1112 = vmatpush2.bf16.msra.mxu0 0
  %1113 = vmatprep.subr.bf16.mxu0 0
  %1114 = vmatpush2.bf16.msra.mxu0 0
  %1115 = vmatprep.subr.bf16.mxu0 0
  %1116 = vmatpush2.bf16.msra.mxu0 0
  %1117 = vmatprep.subr.bf16.mxu0 0
  %1118 = vmatpush2.bf16.msra.mxu0 0
  %1119 = vmatprep.subr.bf16.mxu0 0
  %1120 = vmatpush2.bf16.msra.mxu0 0
  %1121 = vmatprep.subr.bf16.mxu0 0
  %1122 = vmatpush2.bf16.msra.mxu0 0
  %1123 = vmatprep.mubr.bf16.mxu0 0
  %1124 = vmatmul.mubr.bf16.gmra.mxu0 %v1075
  %v1125 = vpop.f32.mrf.mxu0
  %v1126 = vadd.f32 %v966, %v1125
  %v1127 = vpop.f32.mrf.mxu0
  %v1128 = vpop.f32.mrf.mxu0
  %v1129 = vadd.f32 %v971, %v1128
  %v1130 = vpop.f32.mrf.mxu0
  %1131 = vmatprep.mubr.bf16.mxu0 0
  %1132 = vmatmul.mubr.bf16.gmra.mxu0 %v1076
  %v1133 = vpop.f32.mrf.mxu0
  %v1134 = vadd.f32 %v976, %v1133
  %v1135 = vpop.f32.mrf.mxu0
  %v1136 = vpop.f32.mrf.mxu0
  %v1137 = vadd.f32 %v981, %v1136
  %v1138 = vpop.f32.mrf.mxu0
  %1139 = vmatprep.mubr.bf16.mxu0 0
  %1140 = vmatmul.mubr.bf16.gmra.mxu0 %v1077
  %v1141 = vpop.f32.mrf.mxu0
  %v1142 = vadd.f32 %v986, %v1141
  %v1143 = vpop.f32.mrf.mxu0
  %v1144 = vpop.f32.mrf.mxu0
  %v1145 = vadd.f32 %v991, %v1144
  %v1146 = vpop.f32.mrf.mxu0
  %1147 = vmatprep.mubr.bf16.mxu0 0
  %1148 = vmatmul.mubr.bf16.gmra.mxu0 %v1078
  %v1149 = vpop.f32.mrf.mxu0
  %v1150 = vadd.f32 %v996, %v1149
  %v1151 = vpop.f32.mrf.mxu0
  %v1152 = vpop.f32.mrf.mxu0
  %v1153 = vadd.f32 %v1001, %v1152
  %v1154 = vpop.f32.mrf.mxu0
  %1155 = vmatprep.mubr.bf16.mxu0 0
  %1156 = vmatmul.mubr.bf16.gmra.mxu0 %v1079
  %v1157 = vpop.f32.mrf.mxu0
  %v1158 = vadd.f32 %v1006, %v1157
  %v1159 = vpop.f32.mrf.mxu0
  %v1160 = vpop.f32.mrf.mxu0
  %v1161 = vadd.f32 %v1011, %v1160
  %v1162 = vpop.f32.mrf.mxu0
  %1163 = vmatprep.mubr.bf16.mxu0 0
  %1164 = vmatmul.mubr.bf16.gmra.mxu0 %v1080
  %v1165 = vpop.f32.mrf.mxu0
  %v1166 = vadd.f32 %v1016, %v1165
  %v1167 = vpop.f32.mrf.mxu0
  %v1168 = vpop.f32.mrf.mxu0
  %v1169 = vadd.f32 %v1021, %v1168
  %v1170 = vpop.f32.mrf.mxu0
  %1171 = vmatprep.mubr.bf16.mxu0 0
  %1172 = vmatmul.mubr.bf16.gmra.mxu0 %v1081
  %v1173 = vpop.f32.mrf.mxu0
  %v1174 = vadd.f32 %v1026, %v1173
  %v1175 = vpop.f32.mrf.mxu0
  %v1176 = vpop.f32.mrf.mxu0
  %v1177 = vadd.f32 %v1031, %v1176
  %v1178 = vpop.f32.mrf.mxu0
  %1179 = vmatprep.mubr.bf16.mxu0 0
  %1180 = vmatmul.mubr.bf16.gmra.mxu0 %v1082
  %v1181 = vpop.f32.mrf.mxu0
  %v1182 = vadd.f32 %v1036, %v1181
  %v1183 = vpop.f32.mrf.mxu0
  %v1184 = vpop.f32.mrf.mxu0
  %v1185 = vadd.f32 %v1041, %v1184
  %v1186 = vpop.f32.mrf.mxu0
  %1187 = vdwg.mxu0
  %v1188 = vmax.f32 %v1126, 0.0
  %v1189 = vmax.f32 %v1129, 0.0
  %v1190 = vmax.f32 %v1134, 0.0
  %v1191 = vmax.f32 %v1137, 0.0
  %v1192 = vmax.f32 %v1142, 0.0
  %v1193 = vmax.f32 %v1145, 0.0
  %v1194 = vmax.f32 %v1150, 0.0
  %v1195 = vmax.f32 %v1153, 0.0
  %v1196 = vmax.f32 %v1158, 0.0
  %v1197 = vmax.f32 %v1161, 0.0
  %v1198 = vmax.f32 %v1166, 0.0
  %v1199 = vmax.f32 %v1169, 0.0
  %v1200 = vmax.f32 %v1174, 0.0
  %v1201 = vmax.f32 %v1177, 0.0
  %v1202 = vmax.f32 %v1182, 0.0
  %v1203 = vmax.f32 %v1185, 0.0
  %v1204 = vpack.c.bf16 %v1189, %v1188
  %v1205 = vpack.c.bf16 %v1191, %v1190
  %v1206 = vpack.c.bf16 %v1193, %v1192
  %v1207 = vpack.c.bf16 %v1195, %v1194
  %v1208 = vpack.c.bf16 %v1197, %v1196
  %v1209 = vpack.c.bf16 %v1199, %v1198
  %v1210 = vpack.c.bf16 %v1201, %v1200
  %v1211 = vpack.c.bf16 %v1203, %v1202
  %s1212 = scalar_lea.vmem %s3, 192
  %v1213 = vld [vmem:[%s1212] sm:$0xf]
  %v1214 = vld [vmem:[%s1212 + $0x4] sm:$0xf]
  %v1215 = vld [vmem:[%s1212 + $0x8] sm:$0xf]
  %v1216 = vld [vmem:[%s1212 + $0xc] sm:$0xf]
  %v1217 = vld [vmem:[%s1212 + $0x10] sm:$0xf]
  %v1218 = vld [vmem:[%s1212 + $0x14] sm:$0xf]
  %v1219 = vld [vmem:[%s1212 + $0x18] sm:$0xf]
  %v1220 = vld [vmem:[%s1212 + $0x1c] sm:$0xf]
  %v1221 = vld [vmem:[%s1212 + $0x20] sm:$0xf]
  %v1222 = vld [vmem:[%s1212 + $0x24] sm:$0xf]
  %v1223 = vld [vmem:[%s1212 + $0x28] sm:$0xf]
  %v1224 = vld [vmem:[%s1212 + $0x2c] sm:$0xf]
  %v1225 = vld [vmem:[%s1212 + $0x30] sm:$0xf]
  %v1226 = vld [vmem:[%s1212 + $0x34] sm:$0xf]
  %v1227 = vld [vmem:[%s1212 + $0x38] sm:$0xf]
  %v1228 = vld [vmem:[%s1212 + $0x3c] sm:$0xf]
  %s1229 = scalar_lea.vmem %s4, 384
  %v1230 = vld [vmem:[%s1229] sm:$0xff]
  %v1231 = vld [vmem:[%s1229 + $0x8] sm:$0xff]
  %v1232 = vld [vmem:[%s1229 + $0x10] sm:$0xff]
  %v1233 = vld [vmem:[%s1229 + $0x18] sm:$0xff]
  %v1234 = vld [vmem:[%s1229 + $0x20] sm:$0xff]
  %v1235 = vld [vmem:[%s1229 + $0x28] sm:$0xff]
  %v1236 = vld [vmem:[%s1229 + $0x30] sm:$0xff]
  %v1237 = vld [vmem:[%s1229 + $0x38] sm:$0xff]
  %v1238 = vld [vmem:[%s1229 + $0x40] sm:$0xff]
  %v1239 = vld [vmem:[%s1229 + $0x48] sm:$0xff]
  %v1240 = vld [vmem:[%s1229 + $0x50] sm:$0xff]
  %v1241 = vld [vmem:[%s1229 + $0x58] sm:$0xff]
  %v1242 = vld [vmem:[%s1229 + $0x60] sm:$0xff]
  %v1243 = vld [vmem:[%s1229 + $0x68] sm:$0xff]
  %v1244 = vld [vmem:[%s1229 + $0x70] sm:$0xff]
  %v1245 = vld [vmem:[%s1229 + $0x78] sm:$0xff]
  %1247 = vset.pattern.permute.xlu0 0
  %1248 = vperm.xlu0 %1247, %v1230
  %v1249 = vpop.permute.xlu0 %1248
  %1252 = vset.pattern.permute.xlu0 0
  %1253 = vperm.xlu0 %1252, %v1231
  %v1254 = vpop.permute.xlu0 %1253
  %1257 = vset.pattern.permute.xlu0 0
  %1258 = vperm.xlu0 %1257, %v1232
  %v1259 = vpop.permute.xlu0 %1258
  %1262 = vset.pattern.permute.xlu0 0
  %1263 = vperm.xlu0 %1262, %v1233
  %v1264 = vpop.permute.xlu0 %1263
  %1267 = vset.pattern.permute.xlu0 0
  %1268 = vperm.xlu0 %1267, %v1234
  %v1269 = vpop.permute.xlu0 %1268
  %1272 = vset.pattern.permute.xlu0 0
  %1273 = vperm.xlu0 %1272, %v1235
  %v1274 = vpop.permute.xlu0 %1273
  %1277 = vset.pattern.permute.xlu0 0
  %1278 = vperm.xlu0 %1277, %v1236
  %v1279 = vpop.permute.xlu0 %1278
  %1282 = vset.pattern.permute.xlu0 0
  %1283 = vperm.xlu0 %1282, %v1237
  %v1284 = vpop.permute.xlu0 %1283
  %1287 = vset.pattern.permute.xlu0 0
  %1288 = vperm.xlu0 %1287, %v1238
  %v1289 = vpop.permute.xlu0 %1288
  %1292 = vset.pattern.permute.xlu0 0
  %1293 = vperm.xlu0 %1292, %v1239
  %v1294 = vpop.permute.xlu0 %1293
  %1297 = vset.pattern.permute.xlu0 0
  %1298 = vperm.xlu0 %1297, %v1240
  %v1299 = vpop.permute.xlu0 %1298
  %1302 = vset.pattern.permute.xlu0 0
  %1303 = vperm.xlu0 %1302, %v1241
  %v1304 = vpop.permute.xlu0 %1303
  %1307 = vset.pattern.permute.xlu0 0
  %1308 = vperm.xlu0 %1307, %v1242
  %v1309 = vpop.permute.xlu0 %1308
  %1312 = vset.pattern.permute.xlu0 0
  %1313 = vperm.xlu0 %1312, %v1243
  %v1314 = vpop.permute.xlu0 %1313
  %1317 = vset.pattern.permute.xlu0 0
  %1318 = vperm.xlu0 %1317, %v1244
  %v1319 = vpop.permute.xlu0 %1318
  %1322 = vset.pattern.permute.xlu0 0
  %1323 = vperm.xlu0 %1322, %v1245
  %v1324 = vpop.permute.xlu0 %1323
  %v1342 = vunpack.c.l.b16 %v1213
  %v1343 = vunpack.c.l.b16 %v1214
  %v1344 = vunpack.c.l.b16 %v1215
  %v1345 = vunpack.c.l.b16 %v1216
  %v1346 = vunpack.c.l.b16 %v1217
  %v1347 = vunpack.c.l.b16 %v1218
  %v1348 = vunpack.c.l.b16 %v1219
  %v1349 = vunpack.c.l.b16 %v1220
  %v1350 = vunpack.c.l.b16 %v1221
  %v1351 = vunpack.c.l.b16 %v1222
  %v1352 = vunpack.c.l.b16 %v1223
  %v1353 = vunpack.c.l.b16 %v1224
  %v1354 = vunpack.c.l.b16 %v1225
  %v1355 = vunpack.c.l.b16 %v1226
  %v1356 = vunpack.c.l.b16 %v1227
  %v1357 = vunpack.c.l.b16 %v1228
  %v1358 = vpack.c.b16 %v1343, %v1342
  %v1359 = vpack.c.b16 %v1345, %v1344
  %v1360 = vpack.c.b16 %v1347, %v1346
  %v1361 = vpack.c.b16 %v1349, %v1348
  %v1362 = vpack.c.b16 %v1351, %v1350
  %v1363 = vpack.c.b16 %v1353, %v1352
  %v1364 = vpack.c.b16 %v1355, %v1354
  %v1365 = vpack.c.b16 %v1357, %v1356
  %1374 = vmatprep.subr.bf16.mxu0 0
  %1375 = vmatpush1.bf16.msra.mxu0 %v1211
  %1376 = vmatprep.subr.bf16.mxu0 0
  %1377 = vmatpush1.bf16.msra.mxu0 %v1210
  %1378 = vmatprep.subr.bf16.mxu0 0
  %1379 = vmatpush1.bf16.msra.mxu0 %v1209
  %1380 = vmatprep.subr.bf16.mxu0 0
  %1381 = vmatpush1.bf16.msra.mxu0 %v1208
  %1382 = vmatprep.subr.bf16.mxu0 0
  %1383 = vmatpush1.bf16.msra.mxu0 %v1207
  %1384 = vmatprep.subr.bf16.mxu0 0
  %1385 = vmatpush1.bf16.msra.mxu0 %v1206
  %1386 = vmatprep.subr.bf16.mxu0 0
  %1387 = vmatpush1.bf16.msra.mxu0 %v1205
  %1388 = vmatprep.subr.bf16.mxu0 0
  %1389 = vmatpush1.bf16.msra.mxu0 %v1204
  %1390 = vmatprep.subr.bf16.mxu0 0
  %1391 = vmatpush2.bf16.msra.mxu0 0
  %1392 = vmatprep.subr.bf16.mxu0 0
  %1393 = vmatpush2.bf16.msra.mxu0 0
  %1394 = vmatprep.subr.bf16.mxu0 0
  %1395 = vmatpush2.bf16.msra.mxu0 0
  %1396 = vmatprep.subr.bf16.mxu0 0
  %1397 = vmatpush2.bf16.msra.mxu0 0
  %1398 = vmatprep.subr.bf16.mxu0 0
  %1399 = vmatpush2.bf16.msra.mxu0 0
  %1400 = vmatprep.subr.bf16.mxu0 0
  %1401 = vmatpush2.bf16.msra.mxu0 0
  %1402 = vmatprep.subr.bf16.mxu0 0
  %1403 = vmatpush2.bf16.msra.mxu0 0
  %1404 = vmatprep.subr.bf16.mxu0 0
  %1405 = vmatpush2.bf16.msra.mxu0 0
  %1406 = vmatprep.mubr.bf16.mxu0 0
  %1407 = vmatmul.mubr.bf16.gmra.mxu0 %v1358
  %v1408 = vpop.f32.mrf.mxu0
  %v1409 = vadd.f32 %v1249, %v1408
  %v1410 = vpop.f32.mrf.mxu0
  %v1411 = vpop.f32.mrf.mxu0
  %v1412 = vadd.f32 %v1254, %v1411
  %v1413 = vpop.f32.mrf.mxu0
  %1414 = vmatprep.mubr.bf16.mxu0 0
  %1415 = vmatmul.mubr.bf16.gmra.mxu0 %v1359
  %v1416 = vpop.f32.mrf.mxu0
  %v1417 = vadd.f32 %v1259, %v1416
  %v1418 = vpop.f32.mrf.mxu0
  %v1419 = vpop.f32.mrf.mxu0
  %v1420 = vadd.f32 %v1264, %v1419
  %v1421 = vpop.f32.mrf.mxu0
  %1422 = vmatprep.mubr.bf16.mxu0 0
  %1423 = vmatmul.mubr.bf16.gmra.mxu0 %v1360
  %v1424 = vpop.f32.mrf.mxu0
  %v1425 = vadd.f32 %v1269, %v1424
  %v1426 = vpop.f32.mrf.mxu0
  %v1427 = vpop.f32.mrf.mxu0
  %v1428 = vadd.f32 %v1274, %v1427
  %v1429 = vpop.f32.mrf.mxu0
  %1430 = vmatprep.mubr.bf16.mxu0 0
  %1431 = vmatmul.mubr.bf16.gmra.mxu0 %v1361
  %v1432 = vpop.f32.mrf.mxu0
  %v1433 = vadd.f32 %v1279, %v1432
  %v1434 = vpop.f32.mrf.mxu0
  %v1435 = vpop.f32.mrf.mxu0
  %v1436 = vadd.f32 %v1284, %v1435
  %v1437 = vpop.f32.mrf.mxu0
  %1438 = vmatprep.mubr.bf16.mxu0 0
  %1439 = vmatmul.mubr.bf16.gmra.mxu0 %v1362
  %v1440 = vpop.f32.mrf.mxu0
  %v1441 = vadd.f32 %v1289, %v1440
  %v1442 = vpop.f32.mrf.mxu0
  %v1443 = vpop.f32.mrf.mxu0
  %v1444 = vadd.f32 %v1294, %v1443
  %v1445 = vpop.f32.mrf.mxu0
  %1446 = vmatprep.mubr.bf16.mxu0 0
  %1447 = vmatmul.mubr.bf16.gmra.mxu0 %v1363
  %v1448 = vpop.f32.mrf.mxu0
  %v1449 = vadd.f32 %v1299, %v1448
  %v1450 = vpop.f32.mrf.mxu0
  %v1451 = vpop.f32.mrf.mxu0
  %v1452 = vadd.f32 %v1304, %v1451
  %v1453 = vpop.f32.mrf.mxu0
  %1454 = vmatprep.mubr.bf16.mxu0 0
  %1455 = vmatmul.mubr.bf16.gmra.mxu0 %v1364
  %v1456 = vpop.f32.mrf.mxu0
  %v1457 = vadd.f32 %v1309, %v1456
  %v1458 = vpop.f32.mrf.mxu0
  %v1459 = vpop.f32.mrf.mxu0
  %v1460 = vadd.f32 %v1314, %v1459
  %v1461 = vpop.f32.mrf.mxu0
  %1462 = vmatprep.mubr.bf16.mxu0 0
  %1463 = vmatmul.mubr.bf16.gmra.mxu0 %v1365
  %v1464 = vpop.f32.mrf.mxu0
  %v1465 = vadd.f32 %v1319, %v1464
  %v1466 = vpop.f32.mrf.mxu0
  %v1467 = vpop.f32.mrf.mxu0
  %v1468 = vadd.f32 %v1324, %v1467
  %v1469 = vpop.f32.mrf.mxu0
  %1470 = vdwg.mxu0
  %v1471 = vmax.f32 %v1409, 0.0
  %v1472 = vmax.f32 %v1412, 0.0
  %v1473 = vmax.f32 %v1417, 0.0
  %v1474 = vmax.f32 %v1420, 0.0
  %v1475 = vmax.f32 %v1425, 0.0
  %v1476 = vmax.f32 %v1428, 0.0
  %v1477 = vmax.f32 %v1433, 0.0
  %v1478 = vmax.f32 %v1436, 0.0
  %v1479 = vmax.f32 %v1441, 0.0
  %v1480 = vmax.f32 %v1444, 0.0
  %v1481 = vmax.f32 %v1449, 0.0
  %v1482 = vmax.f32 %v1452, 0.0
  %v1483 = vmax.f32 %v1457, 0.0
  %v1484 = vmax.f32 %v1460, 0.0
  %v1485 = vmax.f32 %v1465, 0.0
  %v1486 = vmax.f32 %v1468, 0.0
  %v1487 = vpack.c.bf16 %v1472, %v1471
  %v1488 = vpack.c.bf16 %v1474, %v1473
  %v1489 = vpack.c.bf16 %v1476, %v1475
  %v1490 = vpack.c.bf16 %v1478, %v1477
  %v1491 = vpack.c.bf16 %v1480, %v1479
  %v1492 = vpack.c.bf16 %v1482, %v1481
  %v1493 = vpack.c.bf16 %v1484, %v1483
  %v1494 = vpack.c.bf16 %v1486, %v1485
  %s1495 = scalar_lea.vmem %s3, 256
  %v1496 = vld [vmem:[%s1495] sm:$0xf]
  %v1497 = vld [vmem:[%s1495 + $0x4] sm:$0xf]
  %v1498 = vld [vmem:[%s1495 + $0x8] sm:$0xf]
  %v1499 = vld [vmem:[%s1495 + $0xc] sm:$0xf]
  %v1500 = vld [vmem:[%s1495 + $0x10] sm:$0xf]
  %v1501 = vld [vmem:[%s1495 + $0x14] sm:$0xf]
  %v1502 = vld [vmem:[%s1495 + $0x18] sm:$0xf]
  %v1503 = vld [vmem:[%s1495 + $0x1c] sm:$0xf]
  %v1504 = vld [vmem:[%s1495 + $0x20] sm:$0xf]
  %v1505 = vld [vmem:[%s1495 + $0x24] sm:$0xf]
  %v1506 = vld [vmem:[%s1495 + $0x28] sm:$0xf]
  %v1507 = vld [vmem:[%s1495 + $0x2c] sm:$0xf]
  %v1508 = vld [vmem:[%s1495 + $0x30] sm:$0xf]
  %v1509 = vld [vmem:[%s1495 + $0x34] sm:$0xf]
  %v1510 = vld [vmem:[%s1495 + $0x38] sm:$0xf]
  %v1511 = vld [vmem:[%s1495 + $0x3c] sm:$0xf]
  %s1512 = scalar_lea.vmem %s4, 512
  %v1513 = vld [vmem:[%s1512] sm:$0xff]
  %v1514 = vld [vmem:[%s1512 + $0x8] sm:$0xff]
  %v1515 = vld [vmem:[%s1512 + $0x10] sm:$0xff]
  %v1516 = vld [vmem:[%s1512 + $0x18] sm:$0xff]
  %v1517 = vld [vmem:[%s1512 + $0x20] sm:$0xff]
  %v1518 = vld [vmem:[%s1512 + $0x28] sm:$0xff]
  %v1519 = vld [vmem:[%s1512 + $0x30] sm:$0xff]
  %v1520 = vld [vmem:[%s1512 + $0x38] sm:$0xff]
  %v1521 = vld [vmem:[%s1512 + $0x40] sm:$0xff]
  %v1522 = vld [vmem:[%s1512 + $0x48] sm:$0xff]
  %v1523 = vld [vmem:[%s1512 + $0x50] sm:$0xff]
  %v1524 = vld [vmem:[%s1512 + $0x58] sm:$0xff]
  %v1525 = vld [vmem:[%s1512 + $0x60] sm:$0xff]
  %v1526 = vld [vmem:[%s1512 + $0x68] sm:$0xff]
  %v1527 = vld [vmem:[%s1512 + $0x70] sm:$0xff]
  %v1528 = vld [vmem:[%s1512 + $0x78] sm:$0xff]
  %1530 = vset.pattern.permute.xlu0 0
  %1531 = vperm.xlu0 %1530, %v1513
  %v1532 = vpop.permute.xlu0 %1531
  %1535 = vset.pattern.permute.xlu0 0
  %1536 = vperm.xlu0 %1535, %v1514
  %v1537 = vpop.permute.xlu0 %1536
  %1540 = vset.pattern.permute.xlu0 0
  %1541 = vperm.xlu0 %1540, %v1515
  %v1542 = vpop.permute.xlu0 %1541
  %1545 = vset.pattern.permute.xlu0 0
  %1546 = vperm.xlu0 %1545, %v1516
  %v1547 = vpop.permute.xlu0 %1546
  %1550 = vset.pattern.permute.xlu0 0
  %1551 = vperm.xlu0 %1550, %v1517
  %v1552 = vpop.permute.xlu0 %1551
  %1555 = vset.pattern.permute.xlu0 0
  %1556 = vperm.xlu0 %1555, %v1518
  %v1557 = vpop.permute.xlu0 %1556
  %1560 = vset.pattern.permute.xlu0 0
  %1561 = vperm.xlu0 %1560, %v1519
  %v1562 = vpop.permute.xlu0 %1561
  %1565 = vset.pattern.permute.xlu0 0
  %1566 = vperm.xlu0 %1565, %v1520
  %v1567 = vpop.permute.xlu0 %1566
  %1570 = vset.pattern.permute.xlu0 0
  %1571 = vperm.xlu0 %1570, %v1521
  %v1572 = vpop.permute.xlu0 %1571
  %1575 = vset.pattern.permute.xlu0 0
  %1576 = vperm.xlu0 %1575, %v1522
  %v1577 = vpop.permute.xlu0 %1576
  %1580 = vset.pattern.permute.xlu0 0
  %1581 = vperm.xlu0 %1580, %v1523
  %v1582 = vpop.permute.xlu0 %1581
  %1585 = vset.pattern.permute.xlu0 0
  %1586 = vperm.xlu0 %1585, %v1524
  %v1587 = vpop.permute.xlu0 %1586
  %1590 = vset.pattern.permute.xlu0 0
  %1591 = vperm.xlu0 %1590, %v1525
  %v1592 = vpop.permute.xlu0 %1591
  %1595 = vset.pattern.permute.xlu0 0
  %1596 = vperm.xlu0 %1595, %v1526
  %v1597 = vpop.permute.xlu0 %1596
  %1600 = vset.pattern.permute.xlu0 0
  %1601 = vperm.xlu0 %1600, %v1527
  %v1602 = vpop.permute.xlu0 %1601
  %1605 = vset.pattern.permute.xlu0 0
  %1606 = vperm.xlu0 %1605, %v1528
  %v1607 = vpop.permute.xlu0 %1606
  %v1625 = vunpack.c.l.b16 %v1496
  %v1626 = vunpack.c.l.b16 %v1497
  %v1627 = vunpack.c.l.b16 %v1498
  %v1628 = vunpack.c.l.b16 %v1499
  %v1629 = vunpack.c.l.b16 %v1500
  %v1630 = vunpack.c.l.b16 %v1501
  %v1631 = vunpack.c.l.b16 %v1502
  %v1632 = vunpack.c.l.b16 %v1503
  %v1633 = vunpack.c.l.b16 %v1504
  %v1634 = vunpack.c.l.b16 %v1505
  %v1635 = vunpack.c.l.b16 %v1506
  %v1636 = vunpack.c.l.b16 %v1507
  %v1637 = vunpack.c.l.b16 %v1508
  %v1638 = vunpack.c.l.b16 %v1509
  %v1639 = vunpack.c.l.b16 %v1510
  %v1640 = vunpack.c.l.b16 %v1511
  %v1641 = vpack.c.b16 %v1626, %v1625
  %v1642 = vpack.c.b16 %v1628, %v1627
  %v1643 = vpack.c.b16 %v1630, %v1629
  %v1644 = vpack.c.b16 %v1632, %v1631
  %v1645 = vpack.c.b16 %v1634, %v1633
  %v1646 = vpack.c.b16 %v1636, %v1635
  %v1647 = vpack.c.b16 %v1638, %v1637
  %v1648 = vpack.c.b16 %v1640, %v1639
  %1657 = vmatprep.subr.bf16.mxu0 0
  %1658 = vmatpush1.bf16.msra.mxu0 %v1494
  %1659 = vmatprep.subr.bf16.mxu0 0
  %1660 = vmatpush1.bf16.msra.mxu0 %v1493
  %1661 = vmatprep.subr.bf16.mxu0 0
  %1662 = vmatpush1.bf16.msra.mxu0 %v1492
  %1663 = vmatprep.subr.bf16.mxu0 0
  %1664 = vmatpush1.bf16.msra.mxu0 %v1491
  %1665 = vmatprep.subr.bf16.mxu0 0
  %1666 = vmatpush1.bf16.msra.mxu0 %v1490
  %1667 = vmatprep.subr.bf16.mxu0 0
  %1668 = vmatpush1.bf16.msra.mxu0 %v1489
  %1669 = vmatprep.subr.bf16.mxu0 0
  %1670 = vmatpush1.bf16.msra.mxu0 %v1488
  %1671 = vmatprep.subr.bf16.mxu0 0
  %1672 = vmatpush1.bf16.msra.mxu0 %v1487
  %1673 = vmatprep.subr.bf16.mxu0 0
  %1674 = vmatpush2.bf16.msra.mxu0 0
  %1675 = vmatprep.subr.bf16.mxu0 0
  %1676 = vmatpush2.bf16.msra.mxu0 0
  %1677 = vmatprep.subr.bf16.mxu0 0
  %1678 = vmatpush2.bf16.msra.mxu0 0
  %1679 = vmatprep.subr.bf16.mxu0 0
  %1680 = vmatpush2.bf16.msra.mxu0 0
  %1681 = vmatprep.subr.bf16.mxu0 0
  %1682 = vmatpush2.bf16.msra.mxu0 0
  %1683 = vmatprep.subr.bf16.mxu0 0
  %1684 = vmatpush2.bf16.msra.mxu0 0
  %1685 = vmatprep.subr.bf16.mxu0 0
  %1686 = vmatpush2.bf16.msra.mxu0 0
  %1687 = vmatprep.subr.bf16.mxu0 0
  %1688 = vmatpush2.bf16.msra.mxu0 0
  %1689 = vmatprep.mubr.bf16.mxu0 0
  %1690 = vmatmul.mubr.bf16.gmra.mxu0 %v1641
  %v1691 = vpop.f32.mrf.mxu0
  %v1692 = vadd.f32 %v1532, %v1691
  %v1693 = vpop.f32.mrf.mxu0
  %v1694 = vpop.f32.mrf.mxu0
  %v1695 = vadd.f32 %v1537, %v1694
  %v1696 = vpop.f32.mrf.mxu0
  %1697 = vmatprep.mubr.bf16.mxu0 0
  %1698 = vmatmul.mubr.bf16.gmra.mxu0 %v1642
  %v1699 = vpop.f32.mrf.mxu0
  %v1700 = vadd.f32 %v1542, %v1699
  %v1701 = vpop.f32.mrf.mxu0
  %v1702 = vpop.f32.mrf.mxu0
  %v1703 = vadd.f32 %v1547, %v1702
  %v1704 = vpop.f32.mrf.mxu0
  %1705 = vmatprep.mubr.bf16.mxu0 0
  %1706 = vmatmul.mubr.bf16.gmra.mxu0 %v1643
  %v1707 = vpop.f32.mrf.mxu0
  %v1708 = vadd.f32 %v1552, %v1707
  %v1709 = vpop.f32.mrf.mxu0
  %v1710 = vpop.f32.mrf.mxu0
  %v1711 = vadd.f32 %v1557, %v1710
  %v1712 = vpop.f32.mrf.mxu0
  %1713 = vmatprep.mubr.bf16.mxu0 0
  %1714 = vmatmul.mubr.bf16.gmra.mxu0 %v1644
  %v1715 = vpop.f32.mrf.mxu0
  %v1716 = vadd.f32 %v1562, %v1715
  %v1717 = vpop.f32.mrf.mxu0
  %v1718 = vpop.f32.mrf.mxu0
  %v1719 = vadd.f32 %v1567, %v1718
  %v1720 = vpop.f32.mrf.mxu0
  %1721 = vmatprep.mubr.bf16.mxu0 0
  %1722 = vmatmul.mubr.bf16.gmra.mxu0 %v1645
  %v1723 = vpop.f32.mrf.mxu0
  %v1724 = vadd.f32 %v1572, %v1723
  %v1725 = vpop.f32.mrf.mxu0
  %v1726 = vpop.f32.mrf.mxu0
  %v1727 = vadd.f32 %v1577, %v1726
  %v1728 = vpop.f32.mrf.mxu0
  %1729 = vmatprep.mubr.bf16.mxu0 0
  %1730 = vmatmul.mubr.bf16.gmra.mxu0 %v1646
  %v1731 = vpop.f32.mrf.mxu0
  %v1732 = vadd.f32 %v1582, %v1731
  %v1733 = vpop.f32.mrf.mxu0
  %v1734 = vpop.f32.mrf.mxu0
  %v1735 = vadd.f32 %v1587, %v1734
  %v1736 = vpop.f32.mrf.mxu0
  %1737 = vmatprep.mubr.bf16.mxu0 0
  %1738 = vmatmul.mubr.bf16.gmra.mxu0 %v1647
  %v1739 = vpop.f32.mrf.mxu0
  %v1740 = vadd.f32 %v1592, %v1739
  %v1741 = vpop.f32.mrf.mxu0
  %v1742 = vpop.f32.mrf.mxu0
  %v1743 = vadd.f32 %v1597, %v1742
  %v1744 = vpop.f32.mrf.mxu0
  %1745 = vmatprep.mubr.bf16.mxu0 0
  %1746 = vmatmul.mubr.bf16.gmra.mxu0 %v1648
  %v1747 = vpop.f32.mrf.mxu0
  %v1748 = vadd.f32 %v1602, %v1747
  %v1749 = vpop.f32.mrf.mxu0
  %v1750 = vpop.f32.mrf.mxu0
  %v1751 = vadd.f32 %v1607, %v1750
  %v1752 = vpop.f32.mrf.mxu0
  %1753 = vdwg.mxu0
  %v1754 = vmax.f32 %v1692, 0.0
  %v1755 = vmax.f32 %v1695, 0.0
  %v1756 = vmax.f32 %v1700, 0.0
  %v1757 = vmax.f32 %v1703, 0.0
  %v1758 = vmax.f32 %v1708, 0.0
  %v1759 = vmax.f32 %v1711, 0.0
  %v1760 = vmax.f32 %v1716, 0.0
  %v1761 = vmax.f32 %v1719, 0.0
  %v1762 = vmax.f32 %v1724, 0.0
  %v1763 = vmax.f32 %v1727, 0.0
  %v1764 = vmax.f32 %v1732, 0.0
  %v1765 = vmax.f32 %v1735, 0.0
  %v1766 = vmax.f32 %v1740, 0.0
  %v1767 = vmax.f32 %v1743, 0.0
  %v1768 = vmax.f32 %v1748, 0.0
  %v1769 = vmax.f32 %v1751, 0.0
  %v1770 = vpack.c.bf16 %v1755, %v1754
  %v1771 = vpack.c.bf16 %v1757, %v1756
  %v1772 = vpack.c.bf16 %v1759, %v1758
  %v1773 = vpack.c.bf16 %v1761, %v1760
  %v1774 = vpack.c.bf16 %v1763, %v1762
  %v1775 = vpack.c.bf16 %v1765, %v1764
  %v1776 = vpack.c.bf16 %v1767, %v1766
  %v1777 = vpack.c.bf16 %v1769, %v1768
  %s1778 = scalar_lea.vmem %s3, 320
  %v1779 = vld [vmem:[%s1778] sm:$0xf]
  %v1780 = vld [vmem:[%s1778 + $0x4] sm:$0xf]
  %v1781 = vld [vmem:[%s1778 + $0x8] sm:$0xf]
  %v1782 = vld [vmem:[%s1778 + $0xc] sm:$0xf]
  %v1783 = vld [vmem:[%s1778 + $0x10] sm:$0xf]
  %v1784 = vld [vmem:[%s1778 + $0x14] sm:$0xf]
  %v1785 = vld [vmem:[%s1778 + $0x18] sm:$0xf]
  %v1786 = vld [vmem:[%s1778 + $0x1c] sm:$0xf]
  %v1787 = vld [vmem:[%s1778 + $0x20] sm:$0xf]
  %v1788 = vld [vmem:[%s1778 + $0x24] sm:$0xf]
  %v1789 = vld [vmem:[%s1778 + $0x28] sm:$0xf]
  %v1790 = vld [vmem:[%s1778 + $0x2c] sm:$0xf]
  %v1791 = vld [vmem:[%s1778 + $0x30] sm:$0xf]
  %v1792 = vld [vmem:[%s1778 + $0x34] sm:$0xf]
  %v1793 = vld [vmem:[%s1778 + $0x38] sm:$0xf]
  %v1794 = vld [vmem:[%s1778 + $0x3c] sm:$0xf]
  %s1795 = scalar_lea.vmem %s4, 640
  %v1796 = vld [vmem:[%s1795] sm:$0xff]
  %v1797 = vld [vmem:[%s1795 + $0x8] sm:$0xff]
  %v1798 = vld [vmem:[%s1795 + $0x10] sm:$0xff]
  %v1799 = vld [vmem:[%s1795 + $0x18] sm:$0xff]
  %v1800 = vld [vmem:[%s1795 + $0x20] sm:$0xff]
  %v1801 = vld [vmem:[%s1795 + $0x28] sm:$0xff]
  %v1802 = vld [vmem:[%s1795 + $0x30] sm:$0xff]
  %v1803 = vld [vmem:[%s1795 + $0x38] sm:$0xff]
  %v1804 = vld [vmem:[%s1795 + $0x40] sm:$0xff]
  %v1805 = vld [vmem:[%s1795 + $0x48] sm:$0xff]
  %v1806 = vld [vmem:[%s1795 + $0x50] sm:$0xff]
  %v1807 = vld [vmem:[%s1795 + $0x58] sm:$0xff]
  %v1808 = vld [vmem:[%s1795 + $0x60] sm:$0xff]
  %v1809 = vld [vmem:[%s1795 + $0x68] sm:$0xff]
  %v1810 = vld [vmem:[%s1795 + $0x70] sm:$0xff]
  %v1811 = vld [vmem:[%s1795 + $0x78] sm:$0xff]
  %1813 = vset.pattern.permute.xlu0 0
  %1814 = vperm.xlu0 %1813, %v1796
  %v1815 = vpop.permute.xlu0 %1814
  %1818 = vset.pattern.permute.xlu0 0
  %1819 = vperm.xlu0 %1818, %v1797
  %v1820 = vpop.permute.xlu0 %1819
  %1823 = vset.pattern.permute.xlu0 0
  %1824 = vperm.xlu0 %1823, %v1798
  %v1825 = vpop.permute.xlu0 %1824
  %1828 = vset.pattern.permute.xlu0 0
  %1829 = vperm.xlu0 %1828, %v1799
  %v1830 = vpop.permute.xlu0 %1829
  %1833 = vset.pattern.permute.xlu0 0
  %1834 = vperm.xlu0 %1833, %v1800
  %v1835 = vpop.permute.xlu0 %1834
  %1838 = vset.pattern.permute.xlu0 0
  %1839 = vperm.xlu0 %1838, %v1801
  %v1840 = vpop.permute.xlu0 %1839
  %1843 = vset.pattern.permute.xlu0 0
  %1844 = vperm.xlu0 %1843, %v1802
  %v1845 = vpop.permute.xlu0 %1844
  %1848 = vset.pattern.permute.xlu0 0
  %1849 = vperm.xlu0 %1848, %v1803
  %v1850 = vpop.permute.xlu0 %1849
  %1853 = vset.pattern.permute.xlu0 0
  %1854 = vperm.xlu0 %1853, %v1804
  %v1855 = vpop.permute.xlu0 %1854
  %1858 = vset.pattern.permute.xlu0 0
  %1859 = vperm.xlu0 %1858, %v1805
  %v1860 = vpop.permute.xlu0 %1859
  %1863 = vset.pattern.permute.xlu0 0
  %1864 = vperm.xlu0 %1863, %v1806
  %v1865 = vpop.permute.xlu0 %1864
  %1868 = vset.pattern.permute.xlu0 0
  %1869 = vperm.xlu0 %1868, %v1807
  %v1870 = vpop.permute.xlu0 %1869
  %1873 = vset.pattern.permute.xlu0 0
  %1874 = vperm.xlu0 %1873, %v1808
  %v1875 = vpop.permute.xlu0 %1874
  %1878 = vset.pattern.permute.xlu0 0
  %1879 = vperm.xlu0 %1878, %v1809
  %v1880 = vpop.permute.xlu0 %1879
  %1883 = vset.pattern.permute.xlu0 0
  %1884 = vperm.xlu0 %1883, %v1810
  %v1885 = vpop.permute.xlu0 %1884
  %1888 = vset.pattern.permute.xlu0 0
  %1889 = vperm.xlu0 %1888, %v1811
  %v1890 = vpop.permute.xlu0 %1889
  %v1908 = vunpack.c.l.b16 %v1779
  %v1909 = vunpack.c.l.b16 %v1780
  %v1910 = vunpack.c.l.b16 %v1781
  %v1911 = vunpack.c.l.b16 %v1782
  %v1912 = vunpack.c.l.b16 %v1783
  %v1913 = vunpack.c.l.b16 %v1784
  %v1914 = vunpack.c.l.b16 %v1785
  %v1915 = vunpack.c.l.b16 %v1786
  %v1916 = vunpack.c.l.b16 %v1787
  %v1917 = vunpack.c.l.b16 %v1788
  %v1918 = vunpack.c.l.b16 %v1789
  %v1919 = vunpack.c.l.b16 %v1790
  %v1920 = vunpack.c.l.b16 %v1791
  %v1921 = vunpack.c.l.b16 %v1792
  %v1922 = vunpack.c.l.b16 %v1793
  %v1923 = vunpack.c.l.b16 %v1794
  %v1924 = vpack.c.b16 %v1909, %v1908
  %v1925 = vpack.c.b16 %v1911, %v1910
  %v1926 = vpack.c.b16 %v1913, %v1912
  %v1927 = vpack.c.b16 %v1915, %v1914
  %v1928 = vpack.c.b16 %v1917, %v1916
  %v1929 = vpack.c.b16 %v1919, %v1918
  %v1930 = vpack.c.b16 %v1921, %v1920
  %v1931 = vpack.c.b16 %v1923, %v1922
  %1940 = vmatprep.subr.bf16.mxu0 0
  %1941 = vmatpush1.bf16.msra.mxu0 %v1777
  %1942 = vmatprep.subr.bf16.mxu0 0
  %1943 = vmatpush1.bf16.msra.mxu0 %v1776
  %1944 = vmatprep.subr.bf16.mxu0 0
  %1945 = vmatpush1.bf16.msra.mxu0 %v1775
  %1946 = vmatprep.subr.bf16.mxu0 0
  %1947 = vmatpush1.bf16.msra.mxu0 %v1774
  %1948 = vmatprep.subr.bf16.mxu0 0
  %1949 = vmatpush1.bf16.msra.mxu0 %v1773
  %1950 = vmatprep.subr.bf16.mxu0 0
  %1951 = vmatpush1.bf16.msra.mxu0 %v1772
  %1952 = vmatprep.subr.bf16.mxu0 0
  %1953 = vmatpush1.bf16.msra.mxu0 %v1771
  %1954 = vmatprep.subr.bf16.mxu0 0
  %1955 = vmatpush1.bf16.msra.mxu0 %v1770
  %1956 = vmatprep.subr.bf16.mxu0 0
  %1957 = vmatpush2.bf16.msra.mxu0 0
  %1958 = vmatprep.subr.bf16.mxu0 0
  %1959 = vmatpush2.bf16.msra.mxu0 0
  %1960 = vmatprep.subr.bf16.mxu0 0
  %1961 = vmatpush2.bf16.msra.mxu0 0
  %1962 = vmatprep.subr.bf16.mxu0 0
  %1963 = vmatpush2.bf16.msra.mxu0 0
  %1964 = vmatprep.subr.bf16.mxu0 0
  %1965 = vmatpush2.bf16.msra.mxu0 0
  %1966 = vmatprep.subr.bf16.mxu0 0
  %1967 = vmatpush2.bf16.msra.mxu0 0
  %1968 = vmatprep.subr.bf16.mxu0 0
  %1969 = vmatpush2.bf16.msra.mxu0 0
  %1970 = vmatprep.subr.bf16.mxu0 0
  %1971 = vmatpush2.bf16.msra.mxu0 0
  %1972 = vmatprep.mubr.bf16.mxu0 0
  %1973 = vmatmul.mubr.bf16.gmra.mxu0 %v1924
  %v1974 = vpop.f32.mrf.mxu0
  %v1975 = vadd.f32 %v1815, %v1974
  %v1976 = vpop.f32.mrf.mxu0
  %v1977 = vpop.f32.mrf.mxu0
  %v1978 = vadd.f32 %v1820, %v1977
  %v1979 = vpop.f32.mrf.mxu0
  %1980 = vmatprep.mubr.bf16.mxu0 0
  %1981 = vmatmul.mubr.bf16.gmra.mxu0 %v1925
  %v1982 = vpop.f32.mrf.mxu0
  %v1983 = vadd.f32 %v1825, %v1982
  %v1984 = vpop.f32.mrf.mxu0
  %v1985 = vpop.f32.mrf.mxu0
  %v1986 = vadd.f32 %v1830, %v1985
  %v1987 = vpop.f32.mrf.mxu0
  %1988 = vmatprep.mubr.bf16.mxu0 0
  %1989 = vmatmul.mubr.bf16.gmra.mxu0 %v1926
  %v1990 = vpop.f32.mrf.mxu0
  %v1991 = vadd.f32 %v1835, %v1990
  %v1992 = vpop.f32.mrf.mxu0
  %v1993 = vpop.f32.mrf.mxu0
  %v1994 = vadd.f32 %v1840, %v1993
  %v1995 = vpop.f32.mrf.mxu0
  %1996 = vmatprep.mubr.bf16.mxu0 0
  %1997 = vmatmul.mubr.bf16.gmra.mxu0 %v1927
  %v1998 = vpop.f32.mrf.mxu0
  %v1999 = vadd.f32 %v1845, %v1998
  %v2000 = vpop.f32.mrf.mxu0
  %v2001 = vpop.f32.mrf.mxu0
  %v2002 = vadd.f32 %v1850, %v2001
  %v2003 = vpop.f32.mrf.mxu0
  %2004 = vmatprep.mubr.bf16.mxu0 0
  %2005 = vmatmul.mubr.bf16.gmra.mxu0 %v1928
  %v2006 = vpop.f32.mrf.mxu0
  %v2007 = vadd.f32 %v1855, %v2006
  %v2008 = vpop.f32.mrf.mxu0
  %v2009 = vpop.f32.mrf.mxu0
  %v2010 = vadd.f32 %v1860, %v2009
  %v2011 = vpop.f32.mrf.mxu0
  %2012 = vmatprep.mubr.bf16.mxu0 0
  %2013 = vmatmul.mubr.bf16.gmra.mxu0 %v1929
  %v2014 = vpop.f32.mrf.mxu0
  %v2015 = vadd.f32 %v1865, %v2014
  %v2016 = vpop.f32.mrf.mxu0
  %v2017 = vpop.f32.mrf.mxu0
  %v2018 = vadd.f32 %v1870, %v2017
  %v2019 = vpop.f32.mrf.mxu0
  %2020 = vmatprep.mubr.bf16.mxu0 0
  %2021 = vmatmul.mubr.bf16.gmra.mxu0 %v1930
  %v2022 = vpop.f32.mrf.mxu0
  %v2023 = vadd.f32 %v1875, %v2022
  %v2024 = vpop.f32.mrf.mxu0
  %v2025 = vpop.f32.mrf.mxu0
  %v2026 = vadd.f32 %v1880, %v2025
  %v2027 = vpop.f32.mrf.mxu0
  %2028 = vmatprep.mubr.bf16.mxu0 0
  %2029 = vmatmul.mubr.bf16.gmra.mxu0 %v1931
  %v2030 = vpop.f32.mrf.mxu0
  %v2031 = vadd.f32 %v1885, %v2030
  %v2032 = vpop.f32.mrf.mxu0
  %v2033 = vpop.f32.mrf.mxu0
  %v2034 = vadd.f32 %v1890, %v2033
  %v2035 = vpop.f32.mrf.mxu0
  %2036 = vdwg.mxu0
  %v2037 = vmax.f32 %v1975, 0.0
  %v2038 = vmax.f32 %v1978, 0.0
  %v2039 = vmax.f32 %v1983, 0.0
  %v2040 = vmax.f32 %v1986, 0.0
  %v2041 = vmax.f32 %v1991, 0.0
  %v2042 = vmax.f32 %v1994, 0.0
  %v2043 = vmax.f32 %v1999, 0.0
  %v2044 = vmax.f32 %v2002, 0.0
  %v2045 = vmax.f32 %v2007, 0.0
  %v2046 = vmax.f32 %v2010, 0.0
  %v2047 = vmax.f32 %v2015, 0.0
  %v2048 = vmax.f32 %v2018, 0.0
  %v2049 = vmax.f32 %v2023, 0.0
  %v2050 = vmax.f32 %v2026, 0.0
  %v2051 = vmax.f32 %v2031, 0.0
  %v2052 = vmax.f32 %v2034, 0.0
  %v2053 = vpack.c.bf16 %v2038, %v2037
  %v2054 = vpack.c.bf16 %v2040, %v2039
  %v2055 = vpack.c.bf16 %v2042, %v2041
  %v2056 = vpack.c.bf16 %v2044, %v2043
  %v2057 = vpack.c.bf16 %v2046, %v2045
  %v2058 = vpack.c.bf16 %v2048, %v2047
  %v2059 = vpack.c.bf16 %v2050, %v2049
  %v2060 = vpack.c.bf16 %v2052, %v2051
  %s2061 = scalar_lea.vmem %s3, 384
  %v2062 = vld [vmem:[%s2061] sm:$0xf]
  %v2063 = vld [vmem:[%s2061 + $0x4] sm:$0xf]
  %v2064 = vld [vmem:[%s2061 + $0x8] sm:$0xf]
  %v2065 = vld [vmem:[%s2061 + $0xc] sm:$0xf]
  %v2066 = vld [vmem:[%s2061 + $0x10] sm:$0xf]
  %v2067 = vld [vmem:[%s2061 + $0x14] sm:$0xf]
  %v2068 = vld [vmem:[%s2061 + $0x18] sm:$0xf]
  %v2069 = vld [vmem:[%s2061 + $0x1c] sm:$0xf]
  %v2070 = vld [vmem:[%s2061 + $0x20] sm:$0xf]
  %v2071 = vld [vmem:[%s2061 + $0x24] sm:$0xf]
  %v2072 = vld [vmem:[%s2061 + $0x28] sm:$0xf]
  %v2073 = vld [vmem:[%s2061 + $0x2c] sm:$0xf]
  %v2074 = vld [vmem:[%s2061 + $0x30] sm:$0xf]
  %v2075 = vld [vmem:[%s2061 + $0x34] sm:$0xf]
  %v2076 = vld [vmem:[%s2061 + $0x38] sm:$0xf]
  %v2077 = vld [vmem:[%s2061 + $0x3c] sm:$0xf]
  %s2078 = scalar_lea.vmem %s4, 768
  %v2079 = vld [vmem:[%s2078] sm:$0xff]
  %v2080 = vld [vmem:[%s2078 + $0x8] sm:$0xff]
  %v2081 = vld [vmem:[%s2078 + $0x10] sm:$0xff]
  %v2082 = vld [vmem:[%s2078 + $0x18] sm:$0xff]
  %v2083 = vld [vmem:[%s2078 + $0x20] sm:$0xff]
  %v2084 = vld [vmem:[%s2078 + $0x28] sm:$0xff]
  %v2085 = vld [vmem:[%s2078 + $0x30] sm:$0xff]
  %v2086 = vld [vmem:[%s2078 + $0x38] sm:$0xff]
  %v2087 = vld [vmem:[%s2078 + $0x40] sm:$0xff]
  %v2088 = vld [vmem:[%s2078 + $0x48] sm:$0xff]
  %v2089 = vld [vmem:[%s2078 + $0x50] sm:$0xff]
  %v2090 = vld [vmem:[%s2078 + $0x58] sm:$0xff]
  %v2091 = vld [vmem:[%s2078 + $0x60] sm:$0xff]
  %v2092 = vld [vmem:[%s2078 + $0x68] sm:$0xff]
  %v2093 = vld [vmem:[%s2078 + $0x70] sm:$0xff]
  %v2094 = vld [vmem:[%s2078 + $0x78] sm:$0xff]
  %2096 = vset.pattern.permute.xlu0 0
  %2097 = vperm.xlu0 %2096, %v2079
  %v2098 = vpop.permute.xlu0 %2097
  %2101 = vset.pattern.permute.xlu0 0
  %2102 = vperm.xlu0 %2101, %v2080
  %v2103 = vpop.permute.xlu0 %2102
  %2106 = vset.pattern.permute.xlu0 0
  %2107 = vperm.xlu0 %2106, %v2081
  %v2108 = vpop.permute.xlu0 %2107
  %2111 = vset.pattern.permute.xlu0 0
  %2112 = vperm.xlu0 %2111, %v2082
  %v2113 = vpop.permute.xlu0 %2112
  %2116 = vset.pattern.permute.xlu0 0
  %2117 = vperm.xlu0 %2116, %v2083
  %v2118 = vpop.permute.xlu0 %2117
  %2121 = vset.pattern.permute.xlu0 0
  %2122 = vperm.xlu0 %2121, %v2084
  %v2123 = vpop.permute.xlu0 %2122
  %2126 = vset.pattern.permute.xlu0 0
  %2127 = vperm.xlu0 %2126, %v2085
  %v2128 = vpop.permute.xlu0 %2127
  %2131 = vset.pattern.permute.xlu0 0
  %2132 = vperm.xlu0 %2131, %v2086
  %v2133 = vpop.permute.xlu0 %2132
  %2136 = vset.pattern.permute.xlu0 0
  %2137 = vperm.xlu0 %2136, %v2087
  %v2138 = vpop.permute.xlu0 %2137
  %2141 = vset.pattern.permute.xlu0 0
  %2142 = vperm.xlu0 %2141, %v2088
  %v2143 = vpop.permute.xlu0 %2142
  %2146 = vset.pattern.permute.xlu0 0
  %2147 = vperm.xlu0 %2146, %v2089
  %v2148 = vpop.permute.xlu0 %2147
  %2151 = vset.pattern.permute.xlu0 0
  %2152 = vperm.xlu0 %2151, %v2090
  %v2153 = vpop.permute.xlu0 %2152
  %2156 = vset.pattern.permute.xlu0 0
  %2157 = vperm.xlu0 %2156, %v2091
  %v2158 = vpop.permute.xlu0 %2157
  %2161 = vset.pattern.permute.xlu0 0
  %2162 = vperm.xlu0 %2161, %v2092
  %v2163 = vpop.permute.xlu0 %2162
  %2166 = vset.pattern.permute.xlu0 0
  %2167 = vperm.xlu0 %2166, %v2093
  %v2168 = vpop.permute.xlu0 %2167
  %2171 = vset.pattern.permute.xlu0 0
  %2172 = vperm.xlu0 %2171, %v2094
  %v2173 = vpop.permute.xlu0 %2172
  %v2191 = vunpack.c.l.b16 %v2062
  %v2192 = vunpack.c.l.b16 %v2063
  %v2193 = vunpack.c.l.b16 %v2064
  %v2194 = vunpack.c.l.b16 %v2065
  %v2195 = vunpack.c.l.b16 %v2066
  %v2196 = vunpack.c.l.b16 %v2067
  %v2197 = vunpack.c.l.b16 %v2068
  %v2198 = vunpack.c.l.b16 %v2069
  %v2199 = vunpack.c.l.b16 %v2070
  %v2200 = vunpack.c.l.b16 %v2071
  %v2201 = vunpack.c.l.b16 %v2072
  %v2202 = vunpack.c.l.b16 %v2073
  %v2203 = vunpack.c.l.b16 %v2074
  %v2204 = vunpack.c.l.b16 %v2075
  %v2205 = vunpack.c.l.b16 %v2076
  %v2206 = vunpack.c.l.b16 %v2077
  %v2207 = vpack.c.b16 %v2192, %v2191
  %v2208 = vpack.c.b16 %v2194, %v2193
  %v2209 = vpack.c.b16 %v2196, %v2195
  %v2210 = vpack.c.b16 %v2198, %v2197
  %v2211 = vpack.c.b16 %v2200, %v2199
  %v2212 = vpack.c.b16 %v2202, %v2201
  %v2213 = vpack.c.b16 %v2204, %v2203
  %v2214 = vpack.c.b16 %v2206, %v2205
  %2223 = vmatprep.subr.bf16.mxu0 0
  %2224 = vmatpush1.bf16.msra.mxu0 %v2060
  %2225 = vmatprep.subr.bf16.mxu0 0
  %2226 = vmatpush1.bf16.msra.mxu0 %v2059
  %2227 = vmatprep.subr.bf16.mxu0 0
  %2228 = vmatpush1.bf16.msra.mxu0 %v2058
  %2229 = vmatprep.subr.bf16.mxu0 0
  %2230 = vmatpush1.bf16.msra.mxu0 %v2057
  %2231 = vmatprep.subr.bf16.mxu0 0
  %2232 = vmatpush1.bf16.msra.mxu0 %v2056
  %2233 = vmatprep.subr.bf16.mxu0 0
  %2234 = vmatpush1.bf16.msra.mxu0 %v2055
  %2235 = vmatprep.subr.bf16.mxu0 0
  %2236 = vmatpush1.bf16.msra.mxu0 %v2054
  %2237 = vmatprep.subr.bf16.mxu0 0
  %2238 = vmatpush1.bf16.msra.mxu0 %v2053
  %2239 = vmatprep.subr.bf16.mxu0 0
  %2240 = vmatpush2.bf16.msra.mxu0 0
  %2241 = vmatprep.subr.bf16.mxu0 0
  %2242 = vmatpush2.bf16.msra.mxu0 0
  %2243 = vmatprep.subr.bf16.mxu0 0
  %2244 = vmatpush2.bf16.msra.mxu0 0
  %2245 = vmatprep.subr.bf16.mxu0 0
  %2246 = vmatpush2.bf16.msra.mxu0 0
  %2247 = vmatprep.subr.bf16.mxu0 0
  %2248 = vmatpush2.bf16.msra.mxu0 0
  %2249 = vmatprep.subr.bf16.mxu0 0
  %2250 = vmatpush2.bf16.msra.mxu0 0
  %2251 = vmatprep.subr.bf16.mxu0 0
  %2252 = vmatpush2.bf16.msra.mxu0 0
  %2253 = vmatprep.subr.bf16.mxu0 0
  %2254 = vmatpush2.bf16.msra.mxu0 0
  %2255 = vmatprep.mubr.bf16.mxu0 0
  %2256 = vmatmul.mubr.bf16.gmra.mxu0 %v2207
  %v2257 = vpop.f32.mrf.mxu0
  %v2258 = vadd.f32 %v2098, %v2257
  %v2259 = vpop.f32.mrf.mxu0
  %v2260 = vpop.f32.mrf.mxu0
  %v2261 = vadd.f32 %v2103, %v2260
  %v2262 = vpop.f32.mrf.mxu0
  %2263 = vmatprep.mubr.bf16.mxu0 0
  %2264 = vmatmul.mubr.bf16.gmra.mxu0 %v2208
  %v2265 = vpop.f32.mrf.mxu0
  %v2266 = vadd.f32 %v2108, %v2265
  %v2267 = vpop.f32.mrf.mxu0
  %v2268 = vpop.f32.mrf.mxu0
  %v2269 = vadd.f32 %v2113, %v2268
  %v2270 = vpop.f32.mrf.mxu0
  %2271 = vmatprep.mubr.bf16.mxu0 0
  %2272 = vmatmul.mubr.bf16.gmra.mxu0 %v2209
  %v2273 = vpop.f32.mrf.mxu0
  %v2274 = vadd.f32 %v2118, %v2273
  %v2275 = vpop.f32.mrf.mxu0
  %v2276 = vpop.f32.mrf.mxu0
  %v2277 = vadd.f32 %v2123, %v2276
  %v2278 = vpop.f32.mrf.mxu0
  %2279 = vmatprep.mubr.bf16.mxu0 0
  %2280 = vmatmul.mubr.bf16.gmra.mxu0 %v2210
  %v2281 = vpop.f32.mrf.mxu0
  %v2282 = vadd.f32 %v2128, %v2281
  %v2283 = vpop.f32.mrf.mxu0
  %v2284 = vpop.f32.mrf.mxu0
  %v2285 = vadd.f32 %v2133, %v2284
  %v2286 = vpop.f32.mrf.mxu0
  %2287 = vmatprep.mubr.bf16.mxu0 0
  %2288 = vmatmul.mubr.bf16.gmra.mxu0 %v2211
  %v2289 = vpop.f32.mrf.mxu0
  %v2290 = vadd.f32 %v2138, %v2289
  %v2291 = vpop.f32.mrf.mxu0
  %v2292 = vpop.f32.mrf.mxu0
  %v2293 = vadd.f32 %v2143, %v2292
  %v2294 = vpop.f32.mrf.mxu0
  %2295 = vmatprep.mubr.bf16.mxu0 0
  %2296 = vmatmul.mubr.bf16.gmra.mxu0 %v2212
  %v2297 = vpop.f32.mrf.mxu0
  %v2298 = vadd.f32 %v2148, %v2297
  %v2299 = vpop.f32.mrf.mxu0
  %v2300 = vpop.f32.mrf.mxu0
  %v2301 = vadd.f32 %v2153, %v2300
  %v2302 = vpop.f32.mrf.mxu0
  %2303 = vmatprep.mubr.bf16.mxu0 0
  %2304 = vmatmul.mubr.bf16.gmra.mxu0 %v2213
  %v2305 = vpop.f32.mrf.mxu0
  %v2306 = vadd.f32 %v2158, %v2305
  %v2307 = vpop.f32.mrf.mxu0
  %v2308 = vpop.f32.mrf.mxu0
  %v2309 = vadd.f32 %v2163, %v2308
  %v2310 = vpop.f32.mrf.mxu0
  %2311 = vmatprep.mubr.bf16.mxu0 0
  %2312 = vmatmul.mubr.bf16.gmra.mxu0 %v2214
  %v2313 = vpop.f32.mrf.mxu0
  %v2314 = vadd.f32 %v2168, %v2313
  %v2315 = vpop.f32.mrf.mxu0
  %v2316 = vpop.f32.mrf.mxu0
  %v2317 = vadd.f32 %v2173, %v2316
  %v2318 = vpop.f32.mrf.mxu0
  %2319 = vdwg.mxu0
  %v2320 = vmax.f32 %v2258, 0.0
  %v2321 = vmax.f32 %v2261, 0.0
  %v2322 = vmax.f32 %v2266, 0.0
  %v2323 = vmax.f32 %v2269, 0.0
  %v2324 = vmax.f32 %v2274, 0.0
  %v2325 = vmax.f32 %v2277, 0.0
  %v2326 = vmax.f32 %v2282, 0.0
  %v2327 = vmax.f32 %v2285, 0.0
  %v2328 = vmax.f32 %v2290, 0.0
  %v2329 = vmax.f32 %v2293, 0.0
  %v2330 = vmax.f32 %v2298, 0.0
  %v2331 = vmax.f32 %v2301, 0.0
  %v2332 = vmax.f32 %v2306, 0.0
  %v2333 = vmax.f32 %v2309, 0.0
  %v2334 = vmax.f32 %v2314, 0.0
  %v2335 = vmax.f32 %v2317, 0.0
  %v2336 = vpack.c.bf16 %v2321, %v2320
  %v2337 = vpack.c.bf16 %v2323, %v2322
  %v2338 = vpack.c.bf16 %v2325, %v2324
  %v2339 = vpack.c.bf16 %v2327, %v2326
  %v2340 = vpack.c.bf16 %v2329, %v2328
  %v2341 = vpack.c.bf16 %v2331, %v2330
  %v2342 = vpack.c.bf16 %v2333, %v2332
  %v2343 = vpack.c.bf16 %v2335, %v2334
  %s2344 = scalar_lea.vmem %s3, 448
  %v2345 = vld [vmem:[%s2344] sm:$0xf]
  %v2346 = vld [vmem:[%s2344 + $0x4] sm:$0xf]
  %v2347 = vld [vmem:[%s2344 + $0x8] sm:$0xf]
  %v2348 = vld [vmem:[%s2344 + $0xc] sm:$0xf]
  %v2349 = vld [vmem:[%s2344 + $0x10] sm:$0xf]
  %v2350 = vld [vmem:[%s2344 + $0x14] sm:$0xf]
  %v2351 = vld [vmem:[%s2344 + $0x18] sm:$0xf]
  %v2352 = vld [vmem:[%s2344 + $0x1c] sm:$0xf]
  %v2353 = vld [vmem:[%s2344 + $0x20] sm:$0xf]
  %v2354 = vld [vmem:[%s2344 + $0x24] sm:$0xf]
  %v2355 = vld [vmem:[%s2344 + $0x28] sm:$0xf]
  %v2356 = vld [vmem:[%s2344 + $0x2c] sm:$0xf]
  %v2357 = vld [vmem:[%s2344 + $0x30] sm:$0xf]
  %v2358 = vld [vmem:[%s2344 + $0x34] sm:$0xf]
  %v2359 = vld [vmem:[%s2344 + $0x38] sm:$0xf]
  %v2360 = vld [vmem:[%s2344 + $0x3c] sm:$0xf]
  %s2361 = scalar_lea.vmem %s4, 896
  %v2362 = vld [vmem:[%s2361] sm:$0xff]
  %v2363 = vld [vmem:[%s2361 + $0x8] sm:$0xff]
  %v2364 = vld [vmem:[%s2361 + $0x10] sm:$0xff]
  %v2365 = vld [vmem:[%s2361 + $0x18] sm:$0xff]
  %v2366 = vld [vmem:[%s2361 + $0x20] sm:$0xff]
  %v2367 = vld [vmem:[%s2361 + $0x28] sm:$0xff]
  %v2368 = vld [vmem:[%s2361 + $0x30] sm:$0xff]
  %v2369 = vld [vmem:[%s2361 + $0x38] sm:$0xff]
  %v2370 = vld [vmem:[%s2361 + $0x40] sm:$0xff]
  %v2371 = vld [vmem:[%s2361 + $0x48] sm:$0xff]
  %v2372 = vld [vmem:[%s2361 + $0x50] sm:$0xff]
  %v2373 = vld [vmem:[%s2361 + $0x58] sm:$0xff]
  %v2374 = vld [vmem:[%s2361 + $0x60] sm:$0xff]
  %v2375 = vld [vmem:[%s2361 + $0x68] sm:$0xff]
  %v2376 = vld [vmem:[%s2361 + $0x70] sm:$0xff]
  %v2377 = vld [vmem:[%s2361 + $0x78] sm:$0xff]
  %2379 = vset.pattern.permute.xlu0 0
  %2380 = vperm.xlu0 %2379, %v2362
  %v2381 = vpop.permute.xlu0 %2380
  %2384 = vset.pattern.permute.xlu0 0
  %2385 = vperm.xlu0 %2384, %v2363
  %v2386 = vpop.permute.xlu0 %2385
  %2389 = vset.pattern.permute.xlu0 0
  %2390 = vperm.xlu0 %2389, %v2364
  %v2391 = vpop.permute.xlu0 %2390
  %2394 = vset.pattern.permute.xlu0 0
  %2395 = vperm.xlu0 %2394, %v2365
  %v2396 = vpop.permute.xlu0 %2395
  %2399 = vset.pattern.permute.xlu0 0
  %2400 = vperm.xlu0 %2399, %v2366
  %v2401 = vpop.permute.xlu0 %2400
  %2404 = vset.pattern.permute.xlu0 0
  %2405 = vperm.xlu0 %2404, %v2367
  %v2406 = vpop.permute.xlu0 %2405
  %2409 = vset.pattern.permute.xlu0 0
  %2410 = vperm.xlu0 %2409, %v2368
  %v2411 = vpop.permute.xlu0 %2410
  %2414 = vset.pattern.permute.xlu0 0
  %2415 = vperm.xlu0 %2414, %v2369
  %v2416 = vpop.permute.xlu0 %2415
  %2419 = vset.pattern.permute.xlu0 0
  %2420 = vperm.xlu0 %2419, %v2370
  %v2421 = vpop.permute.xlu0 %2420
  %2424 = vset.pattern.permute.xlu0 0
  %2425 = vperm.xlu0 %2424, %v2371
  %v2426 = vpop.permute.xlu0 %2425
  %2429 = vset.pattern.permute.xlu0 0
  %2430 = vperm.xlu0 %2429, %v2372
  %v2431 = vpop.permute.xlu0 %2430
  %2434 = vset.pattern.permute.xlu0 0
  %2435 = vperm.xlu0 %2434, %v2373
  %v2436 = vpop.permute.xlu0 %2435
  %2439 = vset.pattern.permute.xlu0 0
  %2440 = vperm.xlu0 %2439, %v2374
  %v2441 = vpop.permute.xlu0 %2440
  %2444 = vset.pattern.permute.xlu0 0
  %2445 = vperm.xlu0 %2444, %v2375
  %v2446 = vpop.permute.xlu0 %2445
  %2449 = vset.pattern.permute.xlu0 0
  %2450 = vperm.xlu0 %2449, %v2376
  %v2451 = vpop.permute.xlu0 %2450
  %2454 = vset.pattern.permute.xlu0 0
  %2455 = vperm.xlu0 %2454, %v2377
  %v2456 = vpop.permute.xlu0 %2455
  %v2474 = vunpack.c.l.b16 %v2345
  %v2475 = vunpack.c.l.b16 %v2346
  %v2476 = vunpack.c.l.b16 %v2347
  %v2477 = vunpack.c.l.b16 %v2348
  %v2478 = vunpack.c.l.b16 %v2349
  %v2479 = vunpack.c.l.b16 %v2350
  %v2480 = vunpack.c.l.b16 %v2351
  %v2481 = vunpack.c.l.b16 %v2352
  %v2482 = vunpack.c.l.b16 %v2353
  %v2483 = vunpack.c.l.b16 %v2354
  %v2484 = vunpack.c.l.b16 %v2355
  %v2485 = vunpack.c.l.b16 %v2356
  %v2486 = vunpack.c.l.b16 %v2357
  %v2487 = vunpack.c.l.b16 %v2358
  %v2488 = vunpack.c.l.b16 %v2359
  %v2489 = vunpack.c.l.b16 %v2360
  %v2490 = vpack.c.b16 %v2475, %v2474
  %v2491 = vpack.c.b16 %v2477, %v2476
  %v2492 = vpack.c.b16 %v2479, %v2478
  %v2493 = vpack.c.b16 %v2481, %v2480
  %v2494 = vpack.c.b16 %v2483, %v2482
  %v2495 = vpack.c.b16 %v2485, %v2484
  %v2496 = vpack.c.b16 %v2487, %v2486
  %v2497 = vpack.c.b16 %v2489, %v2488
  %2506 = vmatprep.subr.bf16.mxu0 0
  %2507 = vmatpush1.bf16.msra.mxu0 %v2343
  %2508 = vmatprep.subr.bf16.mxu0 0
  %2509 = vmatpush1.bf16.msra.mxu0 %v2342
  %2510 = vmatprep.subr.bf16.mxu0 0
  %2511 = vmatpush1.bf16.msra.mxu0 %v2341
  %2512 = vmatprep.subr.bf16.mxu0 0
  %2513 = vmatpush1.bf16.msra.mxu0 %v2340
  %2514 = vmatprep.subr.bf16.mxu0 0
  %2515 = vmatpush1.bf16.msra.mxu0 %v2339
  %2516 = vmatprep.subr.bf16.mxu0 0
  %2517 = vmatpush1.bf16.msra.mxu0 %v2338
  %2518 = vmatprep.subr.bf16.mxu0 0
  %2519 = vmatpush1.bf16.msra.mxu0 %v2337
  %2520 = vmatprep.subr.bf16.mxu0 0
  %2521 = vmatpush1.bf16.msra.mxu0 %v2336
  %2522 = vmatprep.subr.bf16.mxu0 0
  %2523 = vmatpush2.bf16.msra.mxu0 0
  %2524 = vmatprep.subr.bf16.mxu0 0
  %2525 = vmatpush2.bf16.msra.mxu0 0
  %2526 = vmatprep.subr.bf16.mxu0 0
  %2527 = vmatpush2.bf16.msra.mxu0 0
  %2528 = vmatprep.subr.bf16.mxu0 0
  %2529 = vmatpush2.bf16.msra.mxu0 0
  %2530 = vmatprep.subr.bf16.mxu0 0
  %2531 = vmatpush2.bf16.msra.mxu0 0
  %2532 = vmatprep.subr.bf16.mxu0 0
  %2533 = vmatpush2.bf16.msra.mxu0 0
  %2534 = vmatprep.subr.bf16.mxu0 0
  %2535 = vmatpush2.bf16.msra.mxu0 0
  %2536 = vmatprep.subr.bf16.mxu0 0
  %2537 = vmatpush2.bf16.msra.mxu0 0
  %2538 = vmatprep.mubr.bf16.mxu0 0
  %2539 = vmatmul.mubr.bf16.gmra.mxu0 %v2490
  %v2540 = vpop.f32.mrf.mxu0
  %v2541 = vadd.f32 %v2381, %v2540
  %v2542 = vpop.f32.mrf.mxu0
  %v2543 = vpop.f32.mrf.mxu0
  %v2544 = vadd.f32 %v2386, %v2543
  %v2545 = vpop.f32.mrf.mxu0
  %2546 = vmatprep.mubr.bf16.mxu0 0
  %2547 = vmatmul.mubr.bf16.gmra.mxu0 %v2491
  %v2548 = vpop.f32.mrf.mxu0
  %v2549 = vadd.f32 %v2391, %v2548
  %v2550 = vpop.f32.mrf.mxu0
  %v2551 = vpop.f32.mrf.mxu0
  %v2552 = vadd.f32 %v2396, %v2551
  %v2553 = vpop.f32.mrf.mxu0
  %2554 = vmatprep.mubr.bf16.mxu0 0
  %2555 = vmatmul.mubr.bf16.gmra.mxu0 %v2492
  %v2556 = vpop.f32.mrf.mxu0
  %v2557 = vadd.f32 %v2401, %v2556
  %v2558 = vpop.f32.mrf.mxu0
  %v2559 = vpop.f32.mrf.mxu0
  %v2560 = vadd.f32 %v2406, %v2559
  %v2561 = vpop.f32.mrf.mxu0
  %2562 = vmatprep.mubr.bf16.mxu0 0
  %2563 = vmatmul.mubr.bf16.gmra.mxu0 %v2493
  %v2564 = vpop.f32.mrf.mxu0
  %v2565 = vadd.f32 %v2411, %v2564
  %v2566 = vpop.f32.mrf.mxu0
  %v2567 = vpop.f32.mrf.mxu0
  %v2568 = vadd.f32 %v2416, %v2567
  %v2569 = vpop.f32.mrf.mxu0
  %2570 = vmatprep.mubr.bf16.mxu0 0
  %2571 = vmatmul.mubr.bf16.gmra.mxu0 %v2494
  %v2572 = vpop.f32.mrf.mxu0
  %v2573 = vadd.f32 %v2421, %v2572
  %v2574 = vpop.f32.mrf.mxu0
  %v2575 = vpop.f32.mrf.mxu0
  %v2576 = vadd.f32 %v2426, %v2575
  %v2577 = vpop.f32.mrf.mxu0
  %2578 = vmatprep.mubr.bf16.mxu0 0
  %2579 = vmatmul.mubr.bf16.gmra.mxu0 %v2495
  %v2580 = vpop.f32.mrf.mxu0
  %v2581 = vadd.f32 %v2431, %v2580
  %v2582 = vpop.f32.mrf.mxu0
  %v2583 = vpop.f32.mrf.mxu0
  %v2584 = vadd.f32 %v2436, %v2583
  %v2585 = vpop.f32.mrf.mxu0
  %2586 = vmatprep.mubr.bf16.mxu0 0
  %2587 = vmatmul.mubr.bf16.gmra.mxu0 %v2496
  %v2588 = vpop.f32.mrf.mxu0
  %v2589 = vadd.f32 %v2441, %v2588
  %v2590 = vpop.f32.mrf.mxu0
  %v2591 = vpop.f32.mrf.mxu0
  %v2592 = vadd.f32 %v2446, %v2591
  %v2593 = vpop.f32.mrf.mxu0
  %2594 = vmatprep.mubr.bf16.mxu0 0
  %2595 = vmatmul.mubr.bf16.gmra.mxu0 %v2497
  %v2596 = vpop.f32.mrf.mxu0
  %v2597 = vadd.f32 %v2451, %v2596
  %v2598 = vpop.f32.mrf.mxu0
  %v2599 = vpop.f32.mrf.mxu0
  %v2600 = vadd.f32 %v2456, %v2599
  %v2601 = vpop.f32.mrf.mxu0
  %2602 = vdwg.mxu0
  %v2603 = vmax.f32 %v2541, 0.0
  %v2604 = vmax.f32 %v2544, 0.0
  %v2605 = vmax.f32 %v2549, 0.0
  %v2606 = vmax.f32 %v2552, 0.0
  %v2607 = vmax.f32 %v2557, 0.0
  %v2608 = vmax.f32 %v2560, 0.0
  %v2609 = vmax.f32 %v2565, 0.0
  %v2610 = vmax.f32 %v2568, 0.0
  %v2611 = vmax.f32 %v2573, 0.0
  %v2612 = vmax.f32 %v2576, 0.0
  %v2613 = vmax.f32 %v2581, 0.0
  %v2614 = vmax.f32 %v2584, 0.0
  %v2615 = vmax.f32 %v2589, 0.0
  %v2616 = vmax.f32 %v2592, 0.0
  %v2617 = vmax.f32 %v2597, 0.0
  %v2618 = vmax.f32 %v2600, 0.0
  %v2619 = vpack.c.bf16 %v2604, %v2603
  %v2620 = vpack.c.bf16 %v2606, %v2605
  %v2621 = vpack.c.bf16 %v2608, %v2607
  %v2622 = vpack.c.bf16 %v2610, %v2609
  %v2623 = vpack.c.bf16 %v2612, %v2611
  %v2624 = vpack.c.bf16 %v2614, %v2613
  %v2625 = vpack.c.bf16 %v2616, %v2615
  %v2626 = vpack.c.bf16 %v2618, %v2617
  %s2627 = scalar_lea.vmem %s3, 512
  %v2628 = vld [vmem:[%s2627] sm:$0xf]
  %v2629 = vld [vmem:[%s2627 + $0x4] sm:$0xf]
  %v2630 = vld [vmem:[%s2627 + $0x8] sm:$0xf]
  %v2631 = vld [vmem:[%s2627 + $0xc] sm:$0xf]
  %v2632 = vld [vmem:[%s2627 + $0x10] sm:$0xf]
  %v2633 = vld [vmem:[%s2627 + $0x14] sm:$0xf]
  %v2634 = vld [vmem:[%s2627 + $0x18] sm:$0xf]
  %v2635 = vld [vmem:[%s2627 + $0x1c] sm:$0xf]
  %v2636 = vld [vmem:[%s2627 + $0x20] sm:$0xf]
  %v2637 = vld [vmem:[%s2627 + $0x24] sm:$0xf]
  %v2638 = vld [vmem:[%s2627 + $0x28] sm:$0xf]
  %v2639 = vld [vmem:[%s2627 + $0x2c] sm:$0xf]
  %v2640 = vld [vmem:[%s2627 + $0x30] sm:$0xf]
  %v2641 = vld [vmem:[%s2627 + $0x34] sm:$0xf]
  %v2642 = vld [vmem:[%s2627 + $0x38] sm:$0xf]
  %v2643 = vld [vmem:[%s2627 + $0x3c] sm:$0xf]
  %s2644 = scalar_lea.vmem %s4, 1024
  %v2645 = vld [vmem:[%s2644] sm:$0xff]
  %v2646 = vld [vmem:[%s2644 + $0x8] sm:$0xff]
  %v2647 = vld [vmem:[%s2644 + $0x10] sm:$0xff]
  %v2648 = vld [vmem:[%s2644 + $0x18] sm:$0xff]
  %v2649 = vld [vmem:[%s2644 + $0x20] sm:$0xff]
  %v2650 = vld [vmem:[%s2644 + $0x28] sm:$0xff]
  %v2651 = vld [vmem:[%s2644 + $0x30] sm:$0xff]
  %v2652 = vld [vmem:[%s2644 + $0x38] sm:$0xff]
  %v2653 = vld [vmem:[%s2644 + $0x40] sm:$0xff]
  %v2654 = vld [vmem:[%s2644 + $0x48] sm:$0xff]
  %v2655 = vld [vmem:[%s2644 + $0x50] sm:$0xff]
  %v2656 = vld [vmem:[%s2644 + $0x58] sm:$0xff]
  %v2657 = vld [vmem:[%s2644 + $0x60] sm:$0xff]
  %v2658 = vld [vmem:[%s2644 + $0x68] sm:$0xff]
  %v2659 = vld [vmem:[%s2644 + $0x70] sm:$0xff]
  %v2660 = vld [vmem:[%s2644 + $0x78] sm:$0xff]
  %2662 = vset.pattern.permute.xlu0 0
  %2663 = vperm.xlu0 %2662, %v2645
  %v2664 = vpop.permute.xlu0 %2663
  %2667 = vset.pattern.permute.xlu0 0
  %2668 = vperm.xlu0 %2667, %v2646
  %v2669 = vpop.permute.xlu0 %2668
  %2672 = vset.pattern.permute.xlu0 0
  %2673 = vperm.xlu0 %2672, %v2647
  %v2674 = vpop.permute.xlu0 %2673
  %2677 = vset.pattern.permute.xlu0 0
  %2678 = vperm.xlu0 %2677, %v2648
  %v2679 = vpop.permute.xlu0 %2678
  %2682 = vset.pattern.permute.xlu0 0
  %2683 = vperm.xlu0 %2682, %v2649
  %v2684 = vpop.permute.xlu0 %2683
  %2687 = vset.pattern.permute.xlu0 0
  %2688 = vperm.xlu0 %2687, %v2650
  %v2689 = vpop.permute.xlu0 %2688
  %2692 = vset.pattern.permute.xlu0 0
  %2693 = vperm.xlu0 %2692, %v2651
  %v2694 = vpop.permute.xlu0 %2693
  %2697 = vset.pattern.permute.xlu0 0
  %2698 = vperm.xlu0 %2697, %v2652
  %v2699 = vpop.permute.xlu0 %2698
  %2702 = vset.pattern.permute.xlu0 0
  %2703 = vperm.xlu0 %2702, %v2653
  %v2704 = vpop.permute.xlu0 %2703
  %2707 = vset.pattern.permute.xlu0 0
  %2708 = vperm.xlu0 %2707, %v2654
  %v2709 = vpop.permute.xlu0 %2708
  %2712 = vset.pattern.permute.xlu0 0
  %2713 = vperm.xlu0 %2712, %v2655
  %v2714 = vpop.permute.xlu0 %2713
  %2717 = vset.pattern.permute.xlu0 0
  %2718 = vperm.xlu0 %2717, %v2656
  %v2719 = vpop.permute.xlu0 %2718
  %2722 = vset.pattern.permute.xlu0 0
  %2723 = vperm.xlu0 %2722, %v2657
  %v2724 = vpop.permute.xlu0 %2723
  %2727 = vset.pattern.permute.xlu0 0
  %2728 = vperm.xlu0 %2727, %v2658
  %v2729 = vpop.permute.xlu0 %2728
  %2732 = vset.pattern.permute.xlu0 0
  %2733 = vperm.xlu0 %2732, %v2659
  %v2734 = vpop.permute.xlu0 %2733
  %2737 = vset.pattern.permute.xlu0 0
  %2738 = vperm.xlu0 %2737, %v2660
  %v2739 = vpop.permute.xlu0 %2738
  %v2757 = vunpack.c.l.b16 %v2628
  %v2758 = vunpack.c.l.b16 %v2629
  %v2759 = vunpack.c.l.b16 %v2630
  %v2760 = vunpack.c.l.b16 %v2631
  %v2761 = vunpack.c.l.b16 %v2632
  %v2762 = vunpack.c.l.b16 %v2633
  %v2763 = vunpack.c.l.b16 %v2634
  %v2764 = vunpack.c.l.b16 %v2635
  %v2765 = vunpack.c.l.b16 %v2636
  %v2766 = vunpack.c.l.b16 %v2637
  %v2767 = vunpack.c.l.b16 %v2638
  %v2768 = vunpack.c.l.b16 %v2639
  %v2769 = vunpack.c.l.b16 %v2640
  %v2770 = vunpack.c.l.b16 %v2641
  %v2771 = vunpack.c.l.b16 %v2642
  %v2772 = vunpack.c.l.b16 %v2643
  %v2773 = vpack.c.b16 %v2758, %v2757
  %v2774 = vpack.c.b16 %v2760, %v2759
  %v2775 = vpack.c.b16 %v2762, %v2761
  %v2776 = vpack.c.b16 %v2764, %v2763
  %v2777 = vpack.c.b16 %v2766, %v2765
  %v2778 = vpack.c.b16 %v2768, %v2767
  %v2779 = vpack.c.b16 %v2770, %v2769
  %v2780 = vpack.c.b16 %v2772, %v2771
  %2789 = vmatprep.subr.bf16.mxu0 0
  %2790 = vmatpush1.bf16.msra.mxu0 %v2626
  %2791 = vmatprep.subr.bf16.mxu0 0
  %2792 = vmatpush1.bf16.msra.mxu0 %v2625
  %2793 = vmatprep.subr.bf16.mxu0 0
  %2794 = vmatpush1.bf16.msra.mxu0 %v2624
  %2795 = vmatprep.subr.bf16.mxu0 0
  %2796 = vmatpush1.bf16.msra.mxu0 %v2623
  %2797 = vmatprep.subr.bf16.mxu0 0
  %2798 = vmatpush1.bf16.msra.mxu0 %v2622
  %2799 = vmatprep.subr.bf16.mxu0 0
  %2800 = vmatpush1.bf16.msra.mxu0 %v2621
  %2801 = vmatprep.subr.bf16.mxu0 0
  %2802 = vmatpush1.bf16.msra.mxu0 %v2620
  %2803 = vmatprep.subr.bf16.mxu0 0
  %2804 = vmatpush1.bf16.msra.mxu0 %v2619
  %2805 = vmatprep.subr.bf16.mxu0 0
  %2806 = vmatpush2.bf16.msra.mxu0 0
  %2807 = vmatprep.subr.bf16.mxu0 0
  %2808 = vmatpush2.bf16.msra.mxu0 0
  %2809 = vmatprep.subr.bf16.mxu0 0
  %2810 = vmatpush2.bf16.msra.mxu0 0
  %2811 = vmatprep.subr.bf16.mxu0 0
  %2812 = vmatpush2.bf16.msra.mxu0 0
  %2813 = vmatprep.subr.bf16.mxu0 0
  %2814 = vmatpush2.bf16.msra.mxu0 0
  %2815 = vmatprep.subr.bf16.mxu0 0
  %2816 = vmatpush2.bf16.msra.mxu0 0
  %2817 = vmatprep.subr.bf16.mxu0 0
  %2818 = vmatpush2.bf16.msra.mxu0 0
  %2819 = vmatprep.subr.bf16.mxu0 0
  %2820 = vmatpush2.bf16.msra.mxu0 0
  %2821 = vmatprep.mubr.bf16.mxu0 0
  %2822 = vmatmul.mubr.bf16.gmra.mxu0 %v2773
  %v2823 = vpop.f32.mrf.mxu0
  %v2824 = vadd.f32 %v2664, %v2823
  %v2825 = vpop.f32.mrf.mxu0
  %v2826 = vpop.f32.mrf.mxu0
  %v2827 = vadd.f32 %v2669, %v2826
  %v2828 = vpop.f32.mrf.mxu0
  %2829 = vmatprep.mubr.bf16.mxu0 0
  %2830 = vmatmul.mubr.bf16.gmra.mxu0 %v2774
  %v2831 = vpop.f32.mrf.mxu0
  %v2832 = vadd.f32 %v2674, %v2831
  %v2833 = vpop.f32.mrf.mxu0
  %v2834 = vpop.f32.mrf.mxu0
  %v2835 = vadd.f32 %v2679, %v2834
  %v2836 = vpop.f32.mrf.mxu0
  %2837 = vmatprep.mubr.bf16.mxu0 0
  %2838 = vmatmul.mubr.bf16.gmra.mxu0 %v2775
  %v2839 = vpop.f32.mrf.mxu0
  %v2840 = vadd.f32 %v2684, %v2839
  %v2841 = vpop.f32.mrf.mxu0
  %v2842 = vpop.f32.mrf.mxu0
  %v2843 = vadd.f32 %v2689, %v2842
  %v2844 = vpop.f32.mrf.mxu0
  %2845 = vmatprep.mubr.bf16.mxu0 0
  %2846 = vmatmul.mubr.bf16.gmra.mxu0 %v2776
  %v2847 = vpop.f32.mrf.mxu0
  %v2848 = vadd.f32 %v2694, %v2847
  %v2849 = vpop.f32.mrf.mxu0
  %v2850 = vpop.f32.mrf.mxu0
  %v2851 = vadd.f32 %v2699, %v2850
  %v2852 = vpop.f32.mrf.mxu0
  %2853 = vmatprep.mubr.bf16.mxu0 0
  %2854 = vmatmul.mubr.bf16.gmra.mxu0 %v2777
  %v2855 = vpop.f32.mrf.mxu0
  %v2856 = vadd.f32 %v2704, %v2855
  %v2857 = vpop.f32.mrf.mxu0
  %v2858 = vpop.f32.mrf.mxu0
  %v2859 = vadd.f32 %v2709, %v2858
  %v2860 = vpop.f32.mrf.mxu0
  %2861 = vmatprep.mubr.bf16.mxu0 0
  %2862 = vmatmul.mubr.bf16.gmra.mxu0 %v2778
  %v2863 = vpop.f32.mrf.mxu0
  %v2864 = vadd.f32 %v2714, %v2863
  %v2865 = vpop.f32.mrf.mxu0
  %v2866 = vpop.f32.mrf.mxu0
  %v2867 = vadd.f32 %v2719, %v2866
  %v2868 = vpop.f32.mrf.mxu0
  %2869 = vmatprep.mubr.bf16.mxu0 0
  %2870 = vmatmul.mubr.bf16.gmra.mxu0 %v2779
  %v2871 = vpop.f32.mrf.mxu0
  %v2872 = vadd.f32 %v2724, %v2871
  %v2873 = vpop.f32.mrf.mxu0
  %v2874 = vpop.f32.mrf.mxu0
  %v2875 = vadd.f32 %v2729, %v2874
  %v2876 = vpop.f32.mrf.mxu0
  %2877 = vmatprep.mubr.bf16.mxu0 0
  %2878 = vmatmul.mubr.bf16.gmra.mxu0 %v2780
  %v2879 = vpop.f32.mrf.mxu0
  %v2880 = vadd.f32 %v2734, %v2879
  %v2881 = vpop.f32.mrf.mxu0
  %v2882 = vpop.f32.mrf.mxu0
  %v2883 = vadd.f32 %v2739, %v2882
  %v2884 = vpop.f32.mrf.mxu0
  %2885 = vdwg.mxu0
  %v2886 = vmax.f32 %v2824, 0.0
  %v2887 = vmax.f32 %v2827, 0.0
  %v2888 = vmax.f32 %v2832, 0.0
  %v2889 = vmax.f32 %v2835, 0.0
  %v2890 = vmax.f32 %v2840, 0.0
  %v2891 = vmax.f32 %v2843, 0.0
  %v2892 = vmax.f32 %v2848, 0.0
  %v2893 = vmax.f32 %v2851, 0.0
  %v2894 = vmax.f32 %v2856, 0.0
  %v2895 = vmax.f32 %v2859, 0.0
  %v2896 = vmax.f32 %v2864, 0.0
  %v2897 = vmax.f32 %v2867, 0.0
  %v2898 = vmax.f32 %v2872, 0.0
  %v2899 = vmax.f32 %v2875, 0.0
  %v2900 = vmax.f32 %v2880, 0.0
  %v2901 = vmax.f32 %v2883, 0.0
  %v2902 = vpack.c.bf16 %v2887, %v2886
  %v2903 = vpack.c.bf16 %v2889, %v2888
  %v2904 = vpack.c.bf16 %v2891, %v2890
  %v2905 = vpack.c.bf16 %v2893, %v2892
  %v2906 = vpack.c.bf16 %v2895, %v2894
  %v2907 = vpack.c.bf16 %v2897, %v2896
  %v2908 = vpack.c.bf16 %v2899, %v2898
  %v2909 = vpack.c.bf16 %v2901, %v2900
  %s2910 = scalar_lea.vmem %s3, 576
  %v2911 = vld [vmem:[%s2910] sm:$0xf]
  %v2912 = vld [vmem:[%s2910 + $0x4] sm:$0xf]
  %v2913 = vld [vmem:[%s2910 + $0x8] sm:$0xf]
  %v2914 = vld [vmem:[%s2910 + $0xc] sm:$0xf]
  %v2915 = vld [vmem:[%s2910 + $0x10] sm:$0xf]
  %v2916 = vld [vmem:[%s2910 + $0x14] sm:$0xf]
  %v2917 = vld [vmem:[%s2910 + $0x18] sm:$0xf]
  %v2918 = vld [vmem:[%s2910 + $0x1c] sm:$0xf]
  %v2919 = vld [vmem:[%s2910 + $0x20] sm:$0xf]
  %v2920 = vld [vmem:[%s2910 + $0x24] sm:$0xf]
  %v2921 = vld [vmem:[%s2910 + $0x28] sm:$0xf]
  %v2922 = vld [vmem:[%s2910 + $0x2c] sm:$0xf]
  %v2923 = vld [vmem:[%s2910 + $0x30] sm:$0xf]
  %v2924 = vld [vmem:[%s2910 + $0x34] sm:$0xf]
  %v2925 = vld [vmem:[%s2910 + $0x38] sm:$0xf]
  %v2926 = vld [vmem:[%s2910 + $0x3c] sm:$0xf]
  %s2927 = scalar_lea.vmem %s4, 1152
  %v2928 = vld [vmem:[%s2927] sm:$0xff]
  %v2929 = vld [vmem:[%s2927 + $0x8] sm:$0xff]
  %v2930 = vld [vmem:[%s2927 + $0x10] sm:$0xff]
  %v2931 = vld [vmem:[%s2927 + $0x18] sm:$0xff]
  %v2932 = vld [vmem:[%s2927 + $0x20] sm:$0xff]
  %v2933 = vld [vmem:[%s2927 + $0x28] sm:$0xff]
  %v2934 = vld [vmem:[%s2927 + $0x30] sm:$0xff]
  %v2935 = vld [vmem:[%s2927 + $0x38] sm:$0xff]
  %v2936 = vld [vmem:[%s2927 + $0x40] sm:$0xff]
  %v2937 = vld [vmem:[%s2927 + $0x48] sm:$0xff]
  %v2938 = vld [vmem:[%s2927 + $0x50] sm:$0xff]
  %v2939 = vld [vmem:[%s2927 + $0x58] sm:$0xff]
  %v2940 = vld [vmem:[%s2927 + $0x60] sm:$0xff]
  %v2941 = vld [vmem:[%s2927 + $0x68] sm:$0xff]
  %v2942 = vld [vmem:[%s2927 + $0x70] sm:$0xff]
  %v2943 = vld [vmem:[%s2927 + $0x78] sm:$0xff]
  %2945 = vset.pattern.permute.xlu0 0
  %2946 = vperm.xlu0 %2945, %v2928
  %v2947 = vpop.permute.xlu0 %2946
  %2950 = vset.pattern.permute.xlu0 0
  %2951 = vperm.xlu0 %2950, %v2929
  %v2952 = vpop.permute.xlu0 %2951
  %2955 = vset.pattern.permute.xlu0 0
  %2956 = vperm.xlu0 %2955, %v2930
  %v2957 = vpop.permute.xlu0 %2956
  %2960 = vset.pattern.permute.xlu0 0
  %2961 = vperm.xlu0 %2960, %v2931
  %v2962 = vpop.permute.xlu0 %2961
  %2965 = vset.pattern.permute.xlu0 0
  %2966 = vperm.xlu0 %2965, %v2932
  %v2967 = vpop.permute.xlu0 %2966
  %2970 = vset.pattern.permute.xlu0 0
  %2971 = vperm.xlu0 %2970, %v2933
  %v2972 = vpop.permute.xlu0 %2971
  %2975 = vset.pattern.permute.xlu0 0
  %2976 = vperm.xlu0 %2975, %v2934
  %v2977 = vpop.permute.xlu0 %2976
  %2980 = vset.pattern.permute.xlu0 0
  %2981 = vperm.xlu0 %2980, %v2935
  %v2982 = vpop.permute.xlu0 %2981
  %2985 = vset.pattern.permute.xlu0 0
  %2986 = vperm.xlu0 %2985, %v2936
  %v2987 = vpop.permute.xlu0 %2986
  %2990 = vset.pattern.permute.xlu0 0
  %2991 = vperm.xlu0 %2990, %v2937
  %v2992 = vpop.permute.xlu0 %2991
  %2995 = vset.pattern.permute.xlu0 0
  %2996 = vperm.xlu0 %2995, %v2938
  %v2997 = vpop.permute.xlu0 %2996
  %3000 = vset.pattern.permute.xlu0 0
  %3001 = vperm.xlu0 %3000, %v2939
  %v3002 = vpop.permute.xlu0 %3001
  %3005 = vset.pattern.permute.xlu0 0
  %3006 = vperm.xlu0 %3005, %v2940
  %v3007 = vpop.permute.xlu0 %3006
  %3010 = vset.pattern.permute.xlu0 0
  %3011 = vperm.xlu0 %3010, %v2941
  %v3012 = vpop.permute.xlu0 %3011
  %3015 = vset.pattern.permute.xlu0 0
  %3016 = vperm.xlu0 %3015, %v2942
  %v3017 = vpop.permute.xlu0 %3016
  %3020 = vset.pattern.permute.xlu0 0
  %3021 = vperm.xlu0 %3020, %v2943
  %v3022 = vpop.permute.xlu0 %3021
  %v3040 = vunpack.c.l.b16 %v2911
  %v3041 = vunpack.c.l.b16 %v2912
  %v3042 = vunpack.c.l.b16 %v2913
  %v3043 = vunpack.c.l.b16 %v2914
  %v3044 = vunpack.c.l.b16 %v2915
  %v3045 = vunpack.c.l.b16 %v2916
  %v3046 = vunpack.c.l.b16 %v2917
  %v3047 = vunpack.c.l.b16 %v2918
  %v3048 = vunpack.c.l.b16 %v2919
  %v3049 = vunpack.c.l.b16 %v2920
  %v3050 = vunpack.c.l.b16 %v2921
  %v3051 = vunpack.c.l.b16 %v2922
  %v3052 = vunpack.c.l.b16 %v2923
  %v3053 = vunpack.c.l.b16 %v2924
  %v3054 = vunpack.c.l.b16 %v2925
  %v3055 = vunpack.c.l.b16 %v2926
  %v3056 = vpack.c.b16 %v3041, %v3040
  %v3057 = vpack.c.b16 %v3043, %v3042
  %v3058 = vpack.c.b16 %v3045, %v3044
  %v3059 = vpack.c.b16 %v3047, %v3046
  %v3060 = vpack.c.b16 %v3049, %v3048
  %v3061 = vpack.c.b16 %v3051, %v3050
  %v3062 = vpack.c.b16 %v3053, %v3052
  %v3063 = vpack.c.b16 %v3055, %v3054
  %3072 = vmatprep.subr.bf16.mxu0 0
  %3073 = vmatpush1.bf16.msra.mxu0 %v2909
  %3074 = vmatprep.subr.bf16.mxu0 0
  %3075 = vmatpush1.bf16.msra.mxu0 %v2908
  %3076 = vmatprep.subr.bf16.mxu0 0
  %3077 = vmatpush1.bf16.msra.mxu0 %v2907
  %3078 = vmatprep.subr.bf16.mxu0 0
  %3079 = vmatpush1.bf16.msra.mxu0 %v2906
  %3080 = vmatprep.subr.bf16.mxu0 0
  %3081 = vmatpush1.bf16.msra.mxu0 %v2905
  %3082 = vmatprep.subr.bf16.mxu0 0
  %3083 = vmatpush1.bf16.msra.mxu0 %v2904
  %3084 = vmatprep.subr.bf16.mxu0 0
  %3085 = vmatpush1.bf16.msra.mxu0 %v2903
  %3086 = vmatprep.subr.bf16.mxu0 0
  %3087 = vmatpush1.bf16.msra.mxu0 %v2902
  %3088 = vmatprep.subr.bf16.mxu0 0
  %3089 = vmatpush2.bf16.msra.mxu0 0
  %3090 = vmatprep.subr.bf16.mxu0 0
  %3091 = vmatpush2.bf16.msra.mxu0 0
  %3092 = vmatprep.subr.bf16.mxu0 0
  %3093 = vmatpush2.bf16.msra.mxu0 0
  %3094 = vmatprep.subr.bf16.mxu0 0
  %3095 = vmatpush2.bf16.msra.mxu0 0
  %3096 = vmatprep.subr.bf16.mxu0 0
  %3097 = vmatpush2.bf16.msra.mxu0 0
  %3098 = vmatprep.subr.bf16.mxu0 0
  %3099 = vmatpush2.bf16.msra.mxu0 0
  %3100 = vmatprep.subr.bf16.mxu0 0
  %3101 = vmatpush2.bf16.msra.mxu0 0
  %3102 = vmatprep.subr.bf16.mxu0 0
  %3103 = vmatpush2.bf16.msra.mxu0 0
  %3104 = vmatprep.mubr.bf16.mxu0 0
  %3105 = vmatmul.mubr.bf16.gmra.mxu0 %v3056
  %v3106 = vpop.f32.mrf.mxu0
  %v3107 = vadd.f32 %v2947, %v3106
  %v3108 = vpop.f32.mrf.mxu0
  %v3109 = vpop.f32.mrf.mxu0
  %v3110 = vadd.f32 %v2952, %v3109
  %v3111 = vpop.f32.mrf.mxu0
  %3112 = vmatprep.mubr.bf16.mxu0 0
  %3113 = vmatmul.mubr.bf16.gmra.mxu0 %v3057
  %v3114 = vpop.f32.mrf.mxu0
  %v3115 = vadd.f32 %v2957, %v3114
  %v3116 = vpop.f32.mrf.mxu0
  %v3117 = vpop.f32.mrf.mxu0
  %v3118 = vadd.f32 %v2962, %v3117
  %v3119 = vpop.f32.mrf.mxu0
  %3120 = vmatprep.mubr.bf16.mxu0 0
  %3121 = vmatmul.mubr.bf16.gmra.mxu0 %v3058
  %v3122 = vpop.f32.mrf.mxu0
  %v3123 = vadd.f32 %v2967, %v3122
  %v3124 = vpop.f32.mrf.mxu0
  %v3125 = vpop.f32.mrf.mxu0
  %v3126 = vadd.f32 %v2972, %v3125
  %v3127 = vpop.f32.mrf.mxu0
  %3128 = vmatprep.mubr.bf16.mxu0 0
  %3129 = vmatmul.mubr.bf16.gmra.mxu0 %v3059
  %v3130 = vpop.f32.mrf.mxu0
  %v3131 = vadd.f32 %v2977, %v3130
  %v3132 = vpop.f32.mrf.mxu0
  %v3133 = vpop.f32.mrf.mxu0
  %v3134 = vadd.f32 %v2982, %v3133
  %v3135 = vpop.f32.mrf.mxu0
  %3136 = vmatprep.mubr.bf16.mxu0 0
  %3137 = vmatmul.mubr.bf16.gmra.mxu0 %v3060
  %v3138 = vpop.f32.mrf.mxu0
  %v3139 = vadd.f32 %v2987, %v3138
  %v3140 = vpop.f32.mrf.mxu0
  %v3141 = vpop.f32.mrf.mxu0
  %v3142 = vadd.f32 %v2992, %v3141
  %v3143 = vpop.f32.mrf.mxu0
  %3144 = vmatprep.mubr.bf16.mxu0 0
  %3145 = vmatmul.mubr.bf16.gmra.mxu0 %v3061
  %v3146 = vpop.f32.mrf.mxu0
  %v3147 = vadd.f32 %v2997, %v3146
  %v3148 = vpop.f32.mrf.mxu0
  %v3149 = vpop.f32.mrf.mxu0
  %v3150 = vadd.f32 %v3002, %v3149
  %v3151 = vpop.f32.mrf.mxu0
  %3152 = vmatprep.mubr.bf16.mxu0 0
  %3153 = vmatmul.mubr.bf16.gmra.mxu0 %v3062
  %v3154 = vpop.f32.mrf.mxu0
  %v3155 = vadd.f32 %v3007, %v3154
  %v3156 = vpop.f32.mrf.mxu0
  %v3157 = vpop.f32.mrf.mxu0
  %v3158 = vadd.f32 %v3012, %v3157
  %v3159 = vpop.f32.mrf.mxu0
  %3160 = vmatprep.mubr.bf16.mxu0 0
  %3161 = vmatmul.mubr.bf16.gmra.mxu0 %v3063
  %v3162 = vpop.f32.mrf.mxu0
  %v3163 = vadd.f32 %v3017, %v3162
  %v3164 = vpop.f32.mrf.mxu0
  %v3165 = vpop.f32.mrf.mxu0
  %v3166 = vadd.f32 %v3022, %v3165
  %v3167 = vpop.f32.mrf.mxu0
  %3168 = vdwg.mxu0
  %v3169 = vmax.f32 %v3107, 0.0
  %v3170 = vmax.f32 %v3110, 0.0
  %v3171 = vmax.f32 %v3115, 0.0
  %v3172 = vmax.f32 %v3118, 0.0
  %v3173 = vmax.f32 %v3123, 0.0
  %v3174 = vmax.f32 %v3126, 0.0
  %v3175 = vmax.f32 %v3131, 0.0
  %v3176 = vmax.f32 %v3134, 0.0
  %v3177 = vmax.f32 %v3139, 0.0
  %v3178 = vmax.f32 %v3142, 0.0
  %v3179 = vmax.f32 %v3147, 0.0
  %v3180 = vmax.f32 %v3150, 0.0
  %v3181 = vmax.f32 %v3155, 0.0
  %v3182 = vmax.f32 %v3158, 0.0
  %v3183 = vmax.f32 %v3163, 0.0
  %v3184 = vmax.f32 %v3166, 0.0
  %v3185 = vpack.c.bf16 %v3170, %v3169
  %v3186 = vpack.c.bf16 %v3172, %v3171
  %v3187 = vpack.c.bf16 %v3174, %v3173
  %v3188 = vpack.c.bf16 %v3176, %v3175
  %v3189 = vpack.c.bf16 %v3178, %v3177
  %v3190 = vpack.c.bf16 %v3180, %v3179
  %v3191 = vpack.c.bf16 %v3182, %v3181
  %v3192 = vpack.c.bf16 %v3184, %v3183
  %v3193 = vld [vmem:[%s5] sm:$0xf]
  %v3194 = vld [vmem:[%s5 + $0x4] sm:$0xf]
  %v3195 = vld [vmem:[%s5 + $0x8] sm:$0xf]
  %v3196 = vld [vmem:[%s6] sm:$0xff]
  %v3197 = vld [vmem:[%s6 + $0x8] sm:$0xff]
  %v3198 = vld [vmem:[%s6 + $0x10] sm:$0xff]
  %3200 = vset.pattern.permute.xlu0 0
  %3201 = vperm.xlu0 %3200, %v3196
  %v3202 = vpop.permute.xlu0 %3201
  %3205 = vset.pattern.permute.xlu0 0
  %3206 = vperm.xlu0 %3205, %v3197
  %v3207 = vpop.permute.xlu0 %3206
  %3210 = vset.pattern.permute.xlu0 0
  %3211 = vperm.xlu0 %3210, %v3198
  %v3212 = vpop.permute.xlu0 %3211
  %v3217 = vunpack.c.l.b16 %v3193
  %v3218 = vunpack.c.l.b16 %v3194
  %v3219 = vunpack.c.l.b16 %v3195
  %v3220 = vpack.c.b16 %v3218, %v3217
  %v3221 = vpack.c.b16 %v3219, %v3219
  %3224 = vmatprep.subr.bf16.mxu0 0
  %3225 = vmatpush1.bf16.msra.mxu0 %v3192
  %3226 = vmatprep.subr.bf16.mxu0 0
  %3227 = vmatpush1.bf16.msra.mxu0 %v3191
  %3228 = vmatprep.subr.bf16.mxu0 0
  %3229 = vmatpush1.bf16.msra.mxu0 %v3190
  %3230 = vmatprep.subr.bf16.mxu0 0
  %3231 = vmatpush1.bf16.msra.mxu0 %v3189
  %3232 = vmatprep.subr.bf16.mxu0 0
  %3233 = vmatpush1.bf16.msra.mxu0 %v3188
  %3234 = vmatprep.subr.bf16.mxu0 0
  %3235 = vmatpush1.bf16.msra.mxu0 %v3187
  %3236 = vmatprep.subr.bf16.mxu0 0
  %3237 = vmatpush1.bf16.msra.mxu0 %v3186
  %3238 = vmatprep.subr.bf16.mxu0 0
  %3239 = vmatpush1.bf16.msra.mxu0 %v3185
  %3240 = vmatprep.subr.bf16.mxu0 0
  %3241 = vmatpush2.bf16.msra.mxu0 0
  %3242 = vmatprep.subr.bf16.mxu0 0
  %3243 = vmatpush2.bf16.msra.mxu0 0
  %3244 = vmatprep.subr.bf16.mxu0 0
  %3245 = vmatpush2.bf16.msra.mxu0 0
  %3246 = vmatprep.subr.bf16.mxu0 0
  %3247 = vmatpush2.bf16.msra.mxu0 0
  %3248 = vmatprep.subr.bf16.mxu0 0
  %3249 = vmatpush2.bf16.msra.mxu0 0
  %3250 = vmatprep.subr.bf16.mxu0 0
  %3251 = vmatpush2.bf16.msra.mxu0 0
  %3252 = vmatprep.subr.bf16.mxu0 0
  %3253 = vmatpush2.bf16.msra.mxu0 0
  %3254 = vmatprep.subr.bf16.mxu0 0
  %3255 = vmatpush2.bf16.msra.mxu0 0
  %3256 = vmatprep.mubr.bf16.mxu0 0
  %3257 = vmatmul.mubr.bf16.gmra.mxu0 %v3220
  %v3258 = vpop.f32.mrf.mxu0
  %v3259 = vadd.f32 %v3202, %v3258
  %v3260 = vpop.f32.mrf.mxu0
  %v3261 = vpop.f32.mrf.mxu0
  %v3262 = vadd.f32 %v3207, %v3261
  %v3263 = vpop.f32.mrf.mxu0
  %3264 = vmatprep.mubr.bf16.mxu0 0
  %3265 = vmatmul.mubr.bf16.gmra.mxu0 %v3221
  %v3266 = vpop.f32.mrf.mxu0
  %v3267 = vadd.f32 %v3212, %v3266
  %v3268 = vpop.f32.mrf.mxu0
  %v3269 = vpop.f32.mrf.mxu0
  %v3270 = vpop.f32.mrf.mxu0
  %3271 = vdwg.mxu0
  %v3272 = vmax.f32 %v3259, 0.0
  %v3273 = vmax.f32 %v3262, 0.0
  %v3274 = vmax.f32 %v3267, 0.0
  %3275 = vst [vmem:[%s7] sm:$0xff] %v3272
  %3276 = vst [vmem:[%s7 + $0x8] sm:$0xff] %v3273
  %3277 = vst [vmem:[%s7 + $0x10] sm:$0xff] %v3274
  // Predicated region
  $region30: #{neuralistica_forward.1} parent=0 // pred_check
    _
  $region31: #{neuralistica_forward.1} parent=0 // pred_check_branch
    %3279 = sbr.rel (0) target = $region33
  $region32: #{neuralistica_forward.1} parent=0 // pred_region
    _
  $region33: #{neuralistica_forward.1} parent=0 // pred_fallthru
    _
  // Predicated region
  $region34: #{neuralistica_forward.1} parent=0 // pred_check
    _
  $region35: #{neuralistica_forward.1} parent=0 // pred_check_branch
    %3281 = sbr.rel (0) target = $region37
  $region36: #{neuralistica_forward.1} parent=0 // pred_region
    _
  $region37: #{neuralistica_forward.1} parent=0 // pred_fallthru
    _

</llo_original>
